<compile_context>
chip_gen: v5e
topology: v5e:2x2
jax: 0.10.0
libtpu: 0.0.40
codegen_flags: <defaults>
</compile_context>

<pallas_src>
import functools

import jax
import jax.numpy as jnp
from jax import lax
from jax.experimental import pallas as pl
from jax.experimental.pallas import tpu as pltpu

EPS = 1e-5          # nn.BatchNorm1d default eps
NEG_SLOPE = 0.01    # nn.LeakyReLU default negative_slope


def _leaky_relu(x):
    return jnp.where(x >= 0, x, NEG_SLOPE * x)


def quant_lstm_kernel(x_ref, wih_ref, whh_ref, bias_ref, bn1_ref,
                      linw_ref, linb_ref, bn2_ref, out_ref,
                      *, blocks, seq_len, hidden, out_dim, batch):
    """Whole QuantLSTM forward in one kernel invocation (grid=()).

    x_ref    : (T*B, H)   bf16   time-major flattened input (row = t*B + b)
    wih_ref  : (blocks, H, 4H) bf16   W_ih^T per block (gate order i, f, g, o)
    whh_ref  : (blocks, H, 4H) bf16   W_hh^T per block
    bias_ref : (blocks, 4H)    f32    b_ih + b_hh per block
    bn1_ref  : (blocks, 2, H)  f32    folded eval-BN [scale, shift] per block
    linw_ref : (T*H, OUT)      bf16   Linear weight^T, rows in t-major/h-minor
                                      order (matches x.view(B, -1))
    linb_ref : (1, OUT)        f32
    bn2_ref  : (2, OUT)        f32    folded final BN [scale, shift]
    out_ref  : (B, OUT)        f32
    """
    H = hidden
    T = seq_len
    B = batch

    # states=None at the top level -> zero-initialized (h, c).  The states are
    # threaded across blocks exactly like the PyTorch forward (block k+1
    # starts from block k's final (h, c)), carried purely in vregs.
    h = jnp.zeros((B, H), jnp.float32)
    c = jnp.zeros((B, H), jnp.float32)
    logits = jnp.zeros((B, out_dim), jnp.float32)

    bias_all = bias_ref[...]   # (blocks, 4H) f32
    bn1_all = bn1_ref[...]     # (blocks, 2, H) f32

    src = x_ref[...]           # (T*B, H) bf16 — block 0 consumes x directly

    for blk in range(blocks):
        wih = wih_ref[blk]                        # (H, 4H) bf16
        whh = whh_ref[blk]                        # (H, 4H) bf16
        bias = bias_all[blk:blk + 1, :]           # (1, 4H) f32
        # Hoisted broadcasts (JAX does not CSE broadcast_in_dim in the unroll).
        bn_scale = jnp.broadcast_to(bn1_all[blk, 0:1, :], (B, H))
        bn_shift = jnp.broadcast_to(bn1_all[blk, 1:2, :], (B, H))
        last = (blk == blocks - 1)

        # Hoisted input projection: one batched bf16 MXU matmul per block,
        # bias folded in.  Only h @ W_hh remains on the serial per-step path.
        gin = jnp.dot(src, wih,
                      preferred_element_type=jnp.float32) + bias   # (T*B, 4H) f32

        ys = []
        for t in range(T):                        # fully unrolled (T static)
            gates = gin[t * B:(t + 1) * B, :] + jnp.dot(
                h.astype(jnp.bfloat16), whh,
                preferred_element_type=jnp.float32)                # (B, 4H) f32
            # Full-width activations (2 EUP passes), then aligned lane slices.
            sig = jax.nn.sigmoid(gates)
            th = jnp.tanh(gates)
            i_g = sig[:, 0 * H:1 * H]
            f_g = sig[:, 1 * H:2 * H]
            g_g = th[:, 2 * H:3 * H]
            o_g = sig[:, 3 * H:4 * H]
            c = f_g * c + i_g * g_g
            h = o_g * jnp.tanh(c)
            # Fused eval-mode BatchNorm1d (scale/shift) + LeakyReLU; Dropout
            # is identity in inference.
            ys.append(_leaky_relu(h * bn_scale + bn_shift))        # (B, H) f32

        if last:
            # Final Linear: one lane-dense (B, T*H) @ (T*H, OUT) epilogue
            # matmul over the register-resident outputs (t-major, h-minor ==
            # x.contiguous().view(B, -1) ordering).
            slab = jnp.concatenate(ys, axis=1).astype(jnp.bfloat16)  # (B, T*H)
            logits = jnp.dot(slab, linw_ref[...],
                             preferred_element_type=jnp.float32)     # (B, OUT)
        else:
            # Feed the next block straight from vregs (no VMEM scratch).
            src = jnp.concatenate(ys, axis=0).astype(jnp.bfloat16)   # (T*B, H)

    # Linear bias, ReLU, folded final BatchNorm, softmax over dim=1.
    z = jnp.maximum(logits + linb_ref[...], 0.0)
    bn2 = bn2_ref[...]                            # (2, OUT)
    z = z * bn2[0:1, :] + bn2[1:2, :]
    m = jnp.max(z, axis=1, keepdims=True)
    e = jnp.exp(z - m)
    denom = jnp.sum(e, axis=1, keepdims=True)
    out_ref[...] = e * pl.reciprocal(denom, approx=True)


def build_quant_lstm(*, blocks, seq_len, hidden, out_dim, batch):
    kernel = functools.partial(quant_lstm_kernel, blocks=blocks,
                               seq_len=seq_len, hidden=hidden,
                               out_dim=out_dim, batch=batch)
    vmem = pl.BlockSpec(memory_space=pltpu.MemorySpace.VMEM)
    # Total resident data < 100 KB -> keep grid=() and whole-array VMEM refs;
    # any grid tiling would only add per-step pipeline overhead here.
    call = pl.pallas_call(
        kernel,
        out_shape=jax.ShapeDtypeStruct((batch, out_dim), jnp.float32),
        in_specs=[vmem] * 8,
        out_specs=vmem,
    )

    @jax.jit
    def forward(x, wih_t, whh_t, bias, bn1, linw_flat, linb, bn2):
        # x: (B, T, H) batch-first (PyTorch convention) -> (T*B, H) for kernel
        x_flat = jnp.transpose(x, (1, 0, 2)).reshape(seq_len * batch, hidden)
        return call(x_flat.astype(jnp.bfloat16),
                    wih_t.astype(jnp.bfloat16),
                    whh_t.astype(jnp.bfloat16),
                    bias, bn1,
                    linw_flat.astype(jnp.bfloat16),
                    linb, bn2)

    return forward


def reference_forward(x, wih, whh, b_ih, b_hh, gamma1, beta1, rmean1, rvar1,
                      lin_w, lin_b, gamma2, beta2, rmean2, rvar2,
                      mm_dtype=jnp.float32):
    """Pure-JAX reference mirroring the PyTorch forward (eval mode).

    mm_dtype selects the matmul operand dtype (f32 = exact module semantics,
    bf16 = precision-matched to the kernel's MXU path).
    """
    B, T, H = x.shape
    blocks = wih.shape[0]
    h = jnp.zeros((B, H), jnp.float32)
    c = jnp.zeros((B, H), jnp.float32)
    cur = x
    for blk in range(blocks):
        wih_b = wih[blk].astype(mm_dtype).T       # (H, 4H)
        whh_b = whh[blk].astype(mm_dtype).T       # (H, 4H)
        bias = b_ih[blk] + b_hh[blk]
        outs = []
        for t in range(T):
            gates = (jnp.dot(cur[:, t, :].astype(mm_dtype), wih_b,
                             preferred_element_type=jnp.float32)
                     + jnp.dot(h.astype(mm_dtype), whh_b,
                               preferred_element_type=jnp.float32)
                     + bias)
            i_g = jax.nn.sigmoid(gates[:, :H])
            f_g = jax.nn.sigmoid(gates[:, H:2 * H])
            g_g = jnp.tanh(gates[:, 2 * H:3 * H])
            o_g = jax.nn.sigmoid(gates[:, 3 * H:])
            c = f_g * c + i_g * g_g
            h = o_g * jnp.tanh(c)
            outs.append(h)
        y = jnp.stack(outs, axis=1)                                  # (B, T, H)
        y = (y - rmean1[blk]) / jnp.sqrt(rvar1[blk] + EPS) * gamma1[blk] + beta1[blk]
        y = jnp.where(y >= 0, y, NEG_SLOPE * y)
        cur = y
    z = jnp.dot(cur.reshape(B, T * H).astype(mm_dtype),
                lin_w.T.astype(mm_dtype),
                preferred_element_type=jnp.float32) + lin_b
    z = jnp.maximum(z, 0.0)
    z = (z - rmean2) / jnp.sqrt(rvar2 + EPS) * gamma2 + beta2
    return jax.nn.softmax(z, axis=1)


if __name__ == "__main__":
    # Module hyperparameters (small but consistent with the forward pass):
    IN_CHN = 32        # feature / LSTM hidden size
    OUT_CHN = 8        # final output classes
    WINDOW = 9         # sequence length is window - 1 = 8
    BLOCKS = 2
    BATCH = 4          # QuantLSTM default batch_size (used by .view)
    T = WINDOW - 1

    key = jax.random.PRNGKey(0)
    ks = jax.random.split(key, 12)
    s = 1.0 / (IN_CHN ** 0.5)

    # LSTM parameters per block (PyTorch gate order i, f, g, o).
    wih = jax.random.uniform(ks[0], (BLOCKS, 4 * IN_CHN, IN_CHN), jnp.float32, -s, s)
    whh = jax.random.uniform(ks[1], (BLOCKS, 4 * IN_CHN, IN_CHN), jnp.float32, -s, s)
    b_ih = jax.random.uniform(ks[2], (BLOCKS, 4 * IN_CHN), jnp.float32, -s, s)
    b_hh = jax.random.uniform(ks[3], (BLOCKS, 4 * IN_CHN), jnp.float32, -s, s)

    # Per-block BatchNorm1d (eval-mode running stats).
    gamma1 = jax.random.uniform(ks[4], (BLOCKS, IN_CHN), jnp.float32, 0.5, 1.5)
    beta1 = jax.random.uniform(ks[5], (BLOCKS, IN_CHN), jnp.float32, -0.5, 0.5)
    rmean1 = jnp.zeros((BLOCKS, IN_CHN), jnp.float32)
    rvar1 = jnp.ones((BLOCKS, IN_CHN), jnp.float32)

    # Final Linear(in_chn*(window-1) -> out_chn) + BatchNorm1d(out_chn).
    s2 = 1.0 / ((IN_CHN * T) ** 0.5)
    lin_w = jax.random.uniform(ks[6], (OUT_CHN, IN_CHN * T), jnp.float32, -s2, s2)
    lin_b = jax.random.uniform(ks[7], (OUT_CHN,), jnp.float32, -s2, s2)
    gamma2 = jax.random.uniform(ks[8], (OUT_CHN,), jnp.float32, 0.5, 1.5)
    beta2 = jax.random.uniform(ks[9], (OUT_CHN,), jnp.float32, -0.5, 0.5)
    rmean2 = jnp.zeros((OUT_CHN,), jnp.float32)
    rvar2 = jnp.ones((OUT_CHN,), jnp.float32)

    # Example input: (batch, window-1, in_chn), batch-first like the module.
    x = jax.random.normal(ks[10], (BATCH, T, IN_CHN), jnp.float32)

    # Kernel-layout parameter packing (glue, plain JAX, done once).
    wih_t = jnp.transpose(wih, (0, 2, 1))                       # (blocks, H, 4H)
    whh_t = jnp.transpose(whh, (0, 2, 1))                       # (blocks, H, 4H)
    bias = b_ih + b_hh                                          # (blocks, 4H)
    bn1_scale = gamma1 * lax.rsqrt(rvar1 + EPS)                 # (blocks, H)
    bn1_shift = beta1 - rmean1 * bn1_scale
    bn1 = jnp.stack([bn1_scale, bn1_shift], axis=1)             # (blocks, 2, H)
    linw_flat = lin_w.T                                         # (T*H, OUT), t-major rows
    linb = lin_b.reshape(1, OUT_CHN)
    bn2_scale = gamma2 * lax.rsqrt(rvar2 + EPS)                 # (OUT,)
    bn2_shift = beta2 - rmean2 * bn2_scale
    bn2 = jnp.stack([bn2_scale, bn2_shift], axis=0)             # (2, OUT)

    forward = build_quant_lstm(blocks=BLOCKS, seq_len=T, hidden=IN_CHN,
                               out_dim=OUT_CHN, batch=BATCH)
    out = forward(x, wih_t, whh_t, bias, bn1, linw_flat, linb, bn2)
    out = jax.block_until_ready(out)

    # Precision-matched reference (same bf16 matmul operands) — tight check.
    ref_matched = reference_forward(x, wih, whh, b_ih, b_hh, gamma1, beta1,
                                    rmean1, rvar1, lin_w, lin_b, gamma2, beta2,
                                    rmean2, rvar2, mm_dtype=jnp.bfloat16)
    # Full-f32 reference (exact module semantics) — loose check covering the
    # bf16 weight rounding accumulated over the 16-step recurrence.
    ref_f32 = reference_forward(x, wih, whh, b_ih, b_hh, gamma1, beta1,
                                rmean1, rvar1, lin_w, lin_b, gamma2, beta2,
                                rmean2, rvar2, mm_dtype=jnp.float32)
    ref_matched = jax.block_until_ready(ref_matched)
    ref_f32 = jax.block_until_ready(ref_f32)

    assert out.shape == (BATCH, OUT_CHN)
    err_m = float(jnp.max(jnp.abs(out - ref_matched)))
    err_f = float(jnp.max(jnp.abs(out - ref_f32)))
    assert jnp.allclose(out, ref_matched, rtol=2e-3, atol=2e-3), (
        f"mismatch vs bf16-matched reference: max abs err {err_m}")
    assert jnp.allclose(out, ref_f32, rtol=0.0, atol=3e-2), (
        f"mismatch vs f32 reference: max abs err {err_f}")

    print("KERNEL_OK")
</pallas_src>

<mosaic_0001>
module attributes {stable_mosaic.version = 11 : i64} {
  func.func @quant_lstm_kernel(%arg0: memref<32x32xbf16, #tpu.memory_space<vmem>>, %arg1: memref<2x32x128xbf16, #tpu.memory_space<vmem>>, %arg2: memref<2x32x128xbf16, #tpu.memory_space<vmem>>, %arg3: memref<2x128xf32, #tpu.memory_space<vmem>>, %arg4: memref<2x2x32xf32, #tpu.memory_space<vmem>>, %arg5: memref<256x8xbf16, #tpu.memory_space<vmem>>, %arg6: memref<1x8xf32, #tpu.memory_space<vmem>>, %arg7: memref<2x8xf32, #tpu.memory_space<vmem>>, %arg8: memref<4x8xf32, #tpu.memory_space<vmem>>) attributes {dimension_semantics = [], scalar_prefetch = 0 : i64, scratch_operands = 0 : i64, tpu.core_type = #tpu.core_type<tc>} {
    %cst = arith.constant 0.000000e+00 : f32
    %0 = vector.broadcast %cst : f32 to vector<4x32xf32>
    %cst_0 = arith.constant 0.000000e+00 : f32
    %1 = vector.broadcast %cst_0 : f32 to vector<4x32xf32>
    %c0 = arith.constant 0 : index
    %c0_1 = arith.constant 0 : index
    %2 = vector.load %arg3[%c0, %c0_1] : memref<2x128xf32, #tpu.memory_space<vmem>>, vector<2x128xf32>
    %c0_2 = arith.constant 0 : index
    %c0_3 = arith.constant 0 : index
    %c0_4 = arith.constant 0 : index
    %3 = vector.load %arg4[%c0_2, %c0_3, %c0_4] : memref<2x2x32xf32, #tpu.memory_space<vmem>>, vector<2x2x32xf32>
    %c0_5 = arith.constant 0 : index
    %c0_6 = arith.constant 0 : index
    %4 = vector.load %arg0[%c0_5, %c0_6] : memref<32x32xbf16, #tpu.memory_space<vmem>>, vector<32x32xbf16>
    %c0_7 = arith.constant 0 : index
    %c0_8 = arith.constant 0 : index
    %c0_9 = arith.constant 0 : index
    %5 = vector.load %arg1[%c0_7, %c0_8, %c0_9] : memref<2x32x128xbf16, #tpu.memory_space<vmem>>, vector<1x32x128xbf16>
    %6 = vector.shape_cast %5 : vector<1x32x128xbf16> to vector<32x128xbf16>
    %c0_10 = arith.constant 0 : index
    %c0_11 = arith.constant 0 : index
    %c0_12 = arith.constant 0 : index
    %7 = vector.load %arg2[%c0_10, %c0_11, %c0_12] : memref<2x32x128xbf16, #tpu.memory_space<vmem>>, vector<1x32x128xbf16>
    %8 = vector.shape_cast %7 : vector<1x32x128xbf16> to vector<32x128xbf16>
    %9 = vector.extract_strided_slice %2 {offsets = [0, 0], sizes = [1, 128], strides = [1, 1]} : vector<2x128xf32> to vector<1x128xf32>
    %10 = vector.extract_strided_slice %3 {offsets = [0, 0, 0], sizes = [1, 1, 32], strides = [1, 1, 1]} : vector<2x2x32xf32> to vector<1x1x32xf32>
    %11 = vector.shape_cast %10 : vector<1x1x32xf32> to vector<1x32xf32>
    %12 = vector.shape_cast %11 : vector<1x32xf32> to vector<1x32xf32>
    %13 = vector.broadcast %12 : vector<1x32xf32> to vector<4x32xf32>
    %14 = vector.extract_strided_slice %3 {offsets = [0, 1, 0], sizes = [1, 1, 32], strides = [1, 1, 1]} : vector<2x2x32xf32> to vector<1x1x32xf32>
    %15 = vector.shape_cast %14 : vector<1x1x32xf32> to vector<1x32xf32>
    %16 = vector.shape_cast %15 : vector<1x32xf32> to vector<1x32xf32>
    %17 = vector.broadcast %16 : vector<1x32xf32> to vector<4x32xf32>
    %cst_13 = arith.constant dense<0.000000e+00> : vector<32x128xf32>
    %18 = tpu.matmul %4, %6, %cst_13 {dimension_numbers = #tpu.dot_dimension_numbers<[1], [0], [0], [1], [0, 0, 1, 1], [], []>} : vector<32x32xbf16>, vector<32x128xbf16>, vector<32x128xf32> -> vector<32x128xf32>
    %19 = vector.broadcast %9 : vector<1x128xf32> to vector<32x128xf32>
    %20 = arith.addf %18, %19 : vector<32x128xf32>
    %21 = vector.extract_strided_slice %20 {offsets = [0, 0], sizes = [4, 128], strides = [1, 1]} : vector<32x128xf32> to vector<4x128xf32>
    %22 = arith.truncf %0 : vector<4x32xf32> to vector<4x32xbf16>
    %cst_14 = arith.constant dense<0.000000e+00> : vector<4x128xf32>
    %23 = tpu.matmul %22, %8, %cst_14 {dimension_numbers = #tpu.dot_dimension_numbers<[1], [0], [0], [1], [0, 0, 1, 1], [], []>} : vector<4x32xbf16>, vector<32x128xbf16>, vector<4x128xf32> -> vector<4x128xf32>
    %24 = arith.addf %21, %23 : vector<4x128xf32>
    %25 = arith.negf %24 : vector<4x128xf32>
    %26 = math.exp %25 : vector<4x128xf32>
    %cst_15 = arith.constant 1.000000e+00 : f32
    %27 = vector.broadcast %cst_15 : f32 to vector<4x128xf32>
    %28 = arith.addf %27, %26 : vector<4x128xf32>
    %29 = arith.divf %27, %28 : vector<4x128xf32>
    %30 = math.tanh %24 : vector<4x128xf32>
    %31 = vector.extract_strided_slice %29 {offsets = [0, 0], sizes = [4, 32], strides = [1, 1]} : vector<4x128xf32> to vector<4x32xf32>
    %32 = vector.extract_strided_slice %29 {offsets = [0, 32], sizes = [4, 32], strides = [1, 1]} : vector<4x128xf32> to vector<4x32xf32>
    %33 = vector.extract_strided_slice %30 {offsets = [0, 64], sizes = [4, 32], strides = [1, 1]} : vector<4x128xf32> to vector<4x32xf32>
    %34 = vector.extract_strided_slice %29 {offsets = [0, 96], sizes = [4, 32], strides = [1, 1]} : vector<4x128xf32> to vector<4x32xf32>
    %35 = arith.mulf %32, %1 : vector<4x32xf32>
    %36 = arith.mulf %31, %33 : vector<4x32xf32>
    %37 = arith.addf %35, %36 : vector<4x32xf32>
    %38 = math.tanh %37 : vector<4x32xf32>
    %39 = arith.mulf %34, %38 : vector<4x32xf32>
    %40 = arith.mulf %39, %13 : vector<4x32xf32>
    %41 = arith.addf %40, %17 : vector<4x32xf32>
    %cst_16 = arith.constant 0.000000e+00 : f32
    %42 = vector.broadcast %cst_16 : f32 to vector<4x32xf32>
    %43 = arith.cmpf oge, %41, %42 : vector<4x32xf32>
    %cst_17 = arith.constant 0.00999999977 : f32
    %44 = vector.broadcast %cst_17 : f32 to vector<4x32xf32>
    %45 = arith.mulf %44, %41 : vector<4x32xf32>
    %46 = arith.select %43, %41, %45 : vector<4x32xi1>, vector<4x32xf32>
    %47 = vector.extract_strided_slice %20 {offsets = [4, 0], sizes = [4, 128], strides = [1, 1]} : vector<32x128xf32> to vector<4x128xf32>
    %48 = arith.truncf %39 : vector<4x32xf32> to vector<4x32xbf16>
    %cst_18 = arith.constant dense<0.000000e+00> : vector<4x128xf32>
    %49 = tpu.matmul %48, %8, %cst_18 {dimension_numbers = #tpu.dot_dimension_numbers<[1], [0], [0], [1], [0, 0, 1, 1], [], []>} : vector<4x32xbf16>, vector<32x128xbf16>, vector<4x128xf32> -> vector<4x128xf32>
    %50 = arith.addf %47, %49 : vector<4x128xf32>
    %51 = arith.negf %50 : vector<4x128xf32>
    %52 = math.exp %51 : vector<4x128xf32>
    %cst_19 = arith.constant 1.000000e+00 : f32
    %53 = vector.broadcast %cst_19 : f32 to vector<4x128xf32>
    %54 = arith.addf %53, %52 : vector<4x128xf32>
    %55 = arith.divf %53, %54 : vector<4x128xf32>
    %56 = math.tanh %50 : vector<4x128xf32>
    %57 = vector.extract_strided_slice %55 {offsets = [0, 0], sizes = [4, 32], strides = [1, 1]} : vector<4x128xf32> to vector<4x32xf32>
    %58 = vector.extract_strided_slice %55 {offsets = [0, 32], sizes = [4, 32], strides = [1, 1]} : vector<4x128xf32> to vector<4x32xf32>
    %59 = vector.extract_strided_slice %56 {offsets = [0, 64], sizes = [4, 32], strides = [1, 1]} : vector<4x128xf32> to vector<4x32xf32>
    %60 = vector.extract_strided_slice %55 {offsets = [0, 96], sizes = [4, 32], strides = [1, 1]} : vector<4x128xf32> to vector<4x32xf32>
    %61 = arith.mulf %58, %37 : vector<4x32xf32>
    %62 = arith.mulf %57, %59 : vector<4x32xf32>
    %63 = arith.addf %61, %62 : vector<4x32xf32>
    %64 = math.tanh %63 : vector<4x32xf32>
    %65 = arith.mulf %60, %64 : vector<4x32xf32>
    %66 = arith.mulf %65, %13 : vector<4x32xf32>
    %67 = arith.addf %66, %17 : vector<4x32xf32>
    %cst_20 = arith.constant 0.000000e+00 : f32
    %68 = vector.broadcast %cst_20 : f32 to vector<4x32xf32>
    %69 = arith.cmpf oge, %67, %68 : vector<4x32xf32>
    %cst_21 = arith.constant 0.00999999977 : f32
    %70 = vector.broadcast %cst_21 : f32 to vector<4x32xf32>
    %71 = arith.mulf %70, %67 : vector<4x32xf32>
    %72 = arith.select %69, %67, %71 : vector<4x32xi1>, vector<4x32xf32>
    %73 = vector.extract_strided_slice %20 {offsets = [8, 0], sizes = [4, 128], strides = [1, 1]} : vector<32x128xf32> to vector<4x128xf32>
    %74 = arith.truncf %65 : vector<4x32xf32> to vector<4x32xbf16>
    %cst_22 = arith.constant dense<0.000000e+00> : vector<4x128xf32>
    %75 = tpu.matmul %74, %8, %cst_22 {dimension_numbers = #tpu.dot_dimension_numbers<[1], [0], [0], [1], [0, 0, 1, 1], [], []>} : vector<4x32xbf16>, vector<32x128xbf16>, vector<4x128xf32> -> vector<4x128xf32>
    %76 = arith.addf %73, %75 : vector<4x128xf32>
    %77 = arith.negf %76 : vector<4x128xf32>
    %78 = math.exp %77 : vector<4x128xf32>
    %cst_23 = arith.constant 1.000000e+00 : f32
    %79 = vector.broadcast %cst_23 : f32 to vector<4x128xf32>
    %80 = arith.addf %79, %78 : vector<4x128xf32>
    %81 = arith.divf %79, %80 : vector<4x128xf32>
    %82 = math.tanh %76 : vector<4x128xf32>
    %83 = vector.extract_strided_slice %81 {offsets = [0, 0], sizes = [4, 32], strides = [1, 1]} : vector<4x128xf32> to vector<4x32xf32>
    %84 = vector.extract_strided_slice %81 {offsets = [0, 32], sizes = [4, 32], strides = [1, 1]} : vector<4x128xf32> to vector<4x32xf32>
    %85 = vector.extract_strided_slice %82 {offsets = [0, 64], sizes = [4, 32], strides = [1, 1]} : vector<4x128xf32> to vector<4x32xf32>
    %86 = vector.extract_strided_slice %81 {offsets = [0, 96], sizes = [4, 32], strides = [1, 1]} : vector<4x128xf32> to vector<4x32xf32>
    %87 = arith.mulf %84, %63 : vector<4x32xf32>
    %88 = arith.mulf %83, %85 : vector<4x32xf32>
    %89 = arith.addf %87, %88 : vector<4x32xf32>
    %90 = math.tanh %89 : vector<4x32xf32>
    %91 = arith.mulf %86, %90 : vector<4x32xf32>
    %92 = arith.mulf %91, %13 : vector<4x32xf32>
    %93 = arith.addf %92, %17 : vector<4x32xf32>
    %cst_24 = arith.constant 0.000000e+00 : f32
    %94 = vector.broadcast %cst_24 : f32 to vector<4x32xf32>
    %95 = arith.cmpf oge, %93, %94 : vector<4x32xf32>
    %cst_25 = arith.constant 0.00999999977 : f32
    %96 = vector.broadcast %cst_25 : f32 to vector<4x32xf32>
    %97 = arith.mulf %96, %93 : vector<4x32xf32>
    %98 = arith.select %95, %93, %97 : vector<4x32xi1>, vector<4x32xf32>
    %99 = vector.extract_strided_slice %20 {offsets = [12, 0], sizes = [4, 128], strides = [1, 1]} : vector<32x128xf32> to vector<4x128xf32>
    %100 = arith.truncf %91 : vector<4x32xf32> to vector<4x32xbf16>
    %cst_26 = arith.constant dense<0.000000e+00> : vector<4x128xf32>
    %101 = tpu.matmul %100, %8, %cst_26 {dimension_numbers = #tpu.dot_dimension_numbers<[1], [0], [0], [1], [0, 0, 1, 1], [], []>} : vector<4x32xbf16>, vector<32x128xbf16>, vector<4x128xf32> -> vector<4x128xf32>
    %102 = arith.addf %99, %101 : vector<4x128xf32>
    %103 = arith.negf %102 : vector<4x128xf32>
    %104 = math.exp %103 : vector<4x128xf32>
    %cst_27 = arith.constant 1.000000e+00 : f32
    %105 = vector.broadcast %cst_27 : f32 to vector<4x128xf32>
    %106 = arith.addf %105, %104 : vector<4x128xf32>
    %107 = arith.divf %105, %106 : vector<4x128xf32>
    %108 = math.tanh %102 : vector<4x128xf32>
    %109 = vector.extract_strided_slice %107 {offsets = [0, 0], sizes = [4, 32], strides = [1, 1]} : vector<4x128xf32> to vector<4x32xf32>
    %110 = vector.extract_strided_slice %107 {offsets = [0, 32], sizes = [4, 32], strides = [1, 1]} : vector<4x128xf32> to vector<4x32xf32>
    %111 = vector.extract_strided_slice %108 {offsets = [0, 64], sizes = [4, 32], strides = [1, 1]} : vector<4x128xf32> to vector<4x32xf32>
    %112 = vector.extract_strided_slice %107 {offsets = [0, 96], sizes = [4, 32], strides = [1, 1]} : vector<4x128xf32> to vector<4x32xf32>
    %113 = arith.mulf %110, %89 : vector<4x32xf32>
    %114 = arith.mulf %109, %111 : vector<4x32xf32>
    %115 = arith.addf %113, %114 : vector<4x32xf32>
    %116 = math.tanh %115 : vector<4x32xf32>
    %117 = arith.mulf %112, %116 : vector<4x32xf32>
    %118 = arith.mulf %117, %13 : vector<4x32xf32>
    %119 = arith.addf %118, %17 : vector<4x32xf32>
    %cst_28 = arith.constant 0.000000e+00 : f32
    %120 = vector.broadcast %cst_28 : f32 to vector<4x32xf32>
    %121 = arith.cmpf oge, %119, %120 : vector<4x32xf32>
    %cst_29 = arith.constant 0.00999999977 : f32
    %122 = vector.broadcast %cst_29 : f32 to vector<4x32xf32>
    %123 = arith.mulf %122, %119 : vector<4x32xf32>
    %124 = arith.select %121, %119, %123 : vector<4x32xi1>, vector<4x32xf32>
    %125 = vector.extract_strided_slice %20 {offsets = [16, 0], sizes = [4, 128], strides = [1, 1]} : vector<32x128xf32> to vector<4x128xf32>
    %126 = arith.truncf %117 : vector<4x32xf32> to vector<4x32xbf16>
    %cst_30 = arith.constant dense<0.000000e+00> : vector<4x128xf32>
    %127 = tpu.matmul %126, %8, %cst_30 {dimension_numbers = #tpu.dot_dimension_numbers<[1], [0], [0], [1], [0, 0, 1, 1], [], []>} : vector<4x32xbf16>, vector<32x128xbf16>, vector<4x128xf32> -> vector<4x128xf32>
    %128 = arith.addf %125, %127 : vector<4x128xf32>
    %129 = arith.negf %128 : vector<4x128xf32>
    %130 = math.exp %129 : vector<4x128xf32>
    %cst_31 = arith.constant 1.000000e+00 : f32
    %131 = vector.broadcast %cst_31 : f32 to vector<4x128xf32>
    %132 = arith.addf %131, %130 : vector<4x128xf32>
    %133 = arith.divf %131, %132 : vector<4x128xf32>
    %134 = math.tanh %128 : vector<4x128xf32>
    %135 = vector.extract_strided_slice %133 {offsets = [0, 0], sizes = [4, 32], strides = [1, 1]} : vector<4x128xf32> to vector<4x32xf32>
    %136 = vector.extract_strided_slice %133 {offsets = [0, 32], sizes = [4, 32], strides = [1, 1]} : vector<4x128xf32> to vector<4x32xf32>
    %137 = vector.extract_strided_slice %134 {offsets = [0, 64], sizes = [4, 32], strides = [1, 1]} : vector<4x128xf32> to vector<4x32xf32>
    %138 = vector.extract_strided_slice %133 {offsets = [0, 96], sizes = [4, 32], strides = [1, 1]} : vector<4x128xf32> to vector<4x32xf32>
    %139 = arith.mulf %136, %115 : vector<4x32xf32>
    %140 = arith.mulf %135, %137 : vector<4x32xf32>
    %141 = arith.addf %139, %140 : vector<4x32xf32>
    %142 = math.tanh %141 : vector<4x32xf32>
    %143 = arith.mulf %138, %142 : vector<4x32xf32>
    %144 = arith.mulf %143, %13 : vector<4x32xf32>
    %145 = arith.addf %144, %17 : vector<4x32xf32>
    %cst_32 = arith.constant 0.000000e+00 : f32
    %146 = vector.broadcast %cst_32 : f32 to vector<4x32xf32>
    %147 = arith.cmpf oge, %145, %146 : vector<4x32xf32>
    %cst_33 = arith.constant 0.00999999977 : f32
    %148 = vector.broadcast %cst_33 : f32 to vector<4x32xf32>
    %149 = arith.mulf %148, %145 : vector<4x32xf32>
    %150 = arith.select %147, %145, %149 : vector<4x32xi1>, vector<4x32xf32>
    %151 = vector.extract_strided_slice %20 {offsets = [20, 0], sizes = [4, 128], strides = [1, 1]} : vector<32x128xf32> to vector<4x128xf32>
    %152 = arith.truncf %143 : vector<4x32xf32> to vector<4x32xbf16>
    %cst_34 = arith.constant dense<0.000000e+00> : vector<4x128xf32>
    %153 = tpu.matmul %152, %8, %cst_34 {dimension_numbers = #tpu.dot_dimension_numbers<[1], [0], [0], [1], [0, 0, 1, 1], [], []>} : vector<4x32xbf16>, vector<32x128xbf16>, vector<4x128xf32> -> vector<4x128xf32>
    %154 = arith.addf %151, %153 : vector<4x128xf32>
    %155 = arith.negf %154 : vector<4x128xf32>
    %156 = math.exp %155 : vector<4x128xf32>
    %cst_35 = arith.constant 1.000000e+00 : f32
    %157 = vector.broadcast %cst_35 : f32 to vector<4x128xf32>
    %158 = arith.addf %157, %156 : vector<4x128xf32>
    %159 = arith.divf %157, %158 : vector<4x128xf32>
    %160 = math.tanh %154 : vector<4x128xf32>
    %161 = vector.extract_strided_slice %159 {offsets = [0, 0], sizes = [4, 32], strides = [1, 1]} : vector<4x128xf32> to vector<4x32xf32>
    %162 = vector.extract_strided_slice %159 {offsets = [0, 32], sizes = [4, 32], strides = [1, 1]} : vector<4x128xf32> to vector<4x32xf32>
    %163 = vector.extract_strided_slice %160 {offsets = [0, 64], sizes = [4, 32], strides = [1, 1]} : vector<4x128xf32> to vector<4x32xf32>
    %164 = vector.extract_strided_slice %159 {offsets = [0, 96], sizes = [4, 32], strides = [1, 1]} : vector<4x128xf32> to vector<4x32xf32>
    %165 = arith.mulf %162, %141 : vector<4x32xf32>
    %166 = arith.mulf %161, %163 : vector<4x32xf32>
    %167 = arith.addf %165, %166 : vector<4x32xf32>
    %168 = math.tanh %167 : vector<4x32xf32>
    %169 = arith.mulf %164, %168 : vector<4x32xf32>
    %170 = arith.mulf %169, %13 : vector<4x32xf32>
    %171 = arith.addf %170, %17 : vector<4x32xf32>
    %cst_36 = arith.constant 0.000000e+00 : f32
    %172 = vector.broadcast %cst_36 : f32 to vector<4x32xf32>
    %173 = arith.cmpf oge, %171, %172 : vector<4x32xf32>
    %cst_37 = arith.constant 0.00999999977 : f32
    %174 = vector.broadcast %cst_37 : f32 to vector<4x32xf32>
    %175 = arith.mulf %174, %171 : vector<4x32xf32>
    %176 = arith.select %173, %171, %175 : vector<4x32xi1>, vector<4x32xf32>
    %177 = vector.extract_strided_slice %20 {offsets = [24, 0], sizes = [4, 128], strides = [1, 1]} : vector<32x128xf32> to vector<4x128xf32>
    %178 = arith.truncf %169 : vector<4x32xf32> to vector<4x32xbf16>
    %cst_38 = arith.constant dense<0.000000e+00> : vector<4x128xf32>
    %179 = tpu.matmul %178, %8, %cst_38 {dimension_numbers = #tpu.dot_dimension_numbers<[1], [0], [0], [1], [0, 0, 1, 1], [], []>} : vector<4x32xbf16>, vector<32x128xbf16>, vector<4x128xf32> -> vector<4x128xf32>
    %180 = arith.addf %177, %179 : vector<4x128xf32>
    %181 = arith.negf %180 : vector<4x128xf32>
    %182 = math.exp %181 : vector<4x128xf32>
    %cst_39 = arith.constant 1.000000e+00 : f32
    %183 = vector.broadcast %cst_39 : f32 to vector<4x128xf32>
    %184 = arith.addf %183, %182 : vector<4x128xf32>
    %185 = arith.divf %183, %184 : vector<4x128xf32>
    %186 = math.tanh %180 : vector<4x128xf32>
    %187 = vector.extract_strided_slice %185 {offsets = [0, 0], sizes = [4, 32], strides = [1, 1]} : vector<4x128xf32> to vector<4x32xf32>
    %188 = vector.extract_strided_slice %185 {offsets = [0, 32], sizes = [4, 32], strides = [1, 1]} : vector<4x128xf32> to vector<4x32xf32>
    %189 = vector.extract_strided_slice %186 {offsets = [0, 64], sizes = [4, 32], strides = [1, 1]} : vector<4x128xf32> to vector<4x32xf32>
    %190 = vector.extract_strided_slice %185 {offsets = [0, 96], sizes = [4, 32], strides = [1, 1]} : vector<4x128xf32> to vector<4x32xf32>
    %191 = arith.mulf %188, %167 : vector<4x32xf32>
    %192 = arith.mulf %187, %189 : vector<4x32xf32>
    %193 = arith.addf %191, %192 : vector<4x32xf32>
    %194 = math.tanh %193 : vector<4x32xf32>
    %195 = arith.mulf %190, %194 : vector<4x32xf32>
    %196 = arith.mulf %195, %13 : vector<4x32xf32>
    %197 = arith.addf %196, %17 : vector<4x32xf32>
    %cst_40 = arith.constant 0.000000e+00 : f32
    %198 = vector.broadcast %cst_40 : f32 to vector<4x32xf32>
    %199 = arith.cmpf oge, %197, %198 : vector<4x32xf32>
    %cst_41 = arith.constant 0.00999999977 : f32
    %200 = vector.broadcast %cst_41 : f32 to vector<4x32xf32>
    %201 = arith.mulf %200, %197 : vector<4x32xf32>
    %202 = arith.select %199, %197, %201 : vector<4x32xi1>, vector<4x32xf32>
    %203 = vector.extract_strided_slice %20 {offsets = [28, 0], sizes = [4, 128], strides = [1, 1]} : vector<32x128xf32> to vector<4x128xf32>
    %204 = arith.truncf %195 : vector<4x32xf32> to vector<4x32xbf16>
    %cst_42 = arith.constant dense<0.000000e+00> : vector<4x128xf32>
    %205 = tpu.matmul %204, %8, %cst_42 {dimension_numbers = #tpu.dot_dimension_numbers<[1], [0], [0], [1], [0, 0, 1, 1], [], []>} : vector<4x32xbf16>, vector<32x128xbf16>, vector<4x128xf32> -> vector<4x128xf32>
    %206 = arith.addf %203, %205 : vector<4x128xf32>
    %207 = arith.negf %206 : vector<4x128xf32>
    %208 = math.exp %207 : vector<4x128xf32>
    %cst_43 = arith.constant 1.000000e+00 : f32
    %209 = vector.broadcast %cst_43 : f32 to vector<4x128xf32>
    %210 = arith.addf %209, %208 : vector<4x128xf32>
    %211 = arith.divf %209, %210 : vector<4x128xf32>
    %212 = math.tanh %206 : vector<4x128xf32>
    %213 = vector.extract_strided_slice %211 {offsets = [0, 0], sizes = [4, 32], strides = [1, 1]} : vector<4x128xf32> to vector<4x32xf32>
    %214 = vector.extract_strided_slice %211 {offsets = [0, 32], sizes = [4, 32], strides = [1, 1]} : vector<4x128xf32> to vector<4x32xf32>
    %215 = vector.extract_strided_slice %212 {offsets = [0, 64], sizes = [4, 32], strides = [1, 1]} : vector<4x128xf32> to vector<4x32xf32>
    %216 = vector.extract_strided_slice %211 {offsets = [0, 96], sizes = [4, 32], strides = [1, 1]} : vector<4x128xf32> to vector<4x32xf32>
    %217 = arith.mulf %214, %193 : vector<4x32xf32>
    %218 = arith.mulf %213, %215 : vector<4x32xf32>
    %219 = arith.addf %217, %218 : vector<4x32xf32>
    %220 = math.tanh %219 : vector<4x32xf32>
    %221 = arith.mulf %216, %220 : vector<4x32xf32>
    %222 = arith.mulf %221, %13 : vector<4x32xf32>
    %223 = arith.addf %222, %17 : vector<4x32xf32>
    %cst_44 = arith.constant 0.000000e+00 : f32
    %224 = vector.broadcast %cst_44 : f32 to vector<4x32xf32>
    %225 = arith.cmpf oge, %223, %224 : vector<4x32xf32>
    %cst_45 = arith.constant 0.00999999977 : f32
    %226 = vector.broadcast %cst_45 : f32 to vector<4x32xf32>
    %227 = arith.mulf %226, %223 : vector<4x32xf32>
    %228 = arith.select %225, %223, %227 : vector<4x32xi1>, vector<4x32xf32>
    %229 = tpu.concatenate %46, %72, %98, %124, %150, %176, %202, %228 in 0 : vector<4x32xf32>, vector<4x32xf32>, vector<4x32xf32>, vector<4x32xf32>, vector<4x32xf32>, vector<4x32xf32>, vector<4x32xf32>, vector<4x32xf32> -> vector<32x32xf32>
    %230 = arith.truncf %229 : vector<32x32xf32> to vector<32x32xbf16>
    %c1 = arith.constant 1 : index
    %c0_46 = arith.constant 0 : index
    %c0_47 = arith.constant 0 : index
    %231 = vector.load %arg1[%c1, %c0_46, %c0_47] : memref<2x32x128xbf16, #tpu.memory_space<vmem>>, vector<1x32x128xbf16>
    %232 = vector.shape_cast %231 : vector<1x32x128xbf16> to vector<32x128xbf16>
    %c1_48 = arith.constant 1 : index
    %c0_49 = arith.constant 0 : index
    %c0_50 = arith.constant 0 : index
    %233 = vector.load %arg2[%c1_48, %c0_49, %c0_50] : memref<2x32x128xbf16, #tpu.memory_space<vmem>>, vector<1x32x128xbf16>
    %234 = vector.shape_cast %233 : vector<1x32x128xbf16> to vector<32x128xbf16>
    %235 = vector.extract_strided_slice %2 {offsets = [1, 0], sizes = [1, 128], strides = [1, 1]} : vector<2x128xf32> to vector<1x128xf32>
    %236 = vector.extract_strided_slice %3 {offsets = [1, 0, 0], sizes = [1, 1, 32], strides = [1, 1, 1]} : vector<2x2x32xf32> to vector<1x1x32xf32>
    %237 = vector.shape_cast %236 : vector<1x1x32xf32> to vector<1x32xf32>
    %238 = vector.shape_cast %237 : vector<1x32xf32> to vector<1x32xf32>
    %239 = vector.broadcast %238 : vector<1x32xf32> to vector<4x32xf32>
    %240 = vector.extract_strided_slice %3 {offsets = [1, 1, 0], sizes = [1, 1, 32], strides = [1, 1, 1]} : vector<2x2x32xf32> to vector<1x1x32xf32>
    %241 = vector.shape_cast %240 : vector<1x1x32xf32> to vector<1x32xf32>
    %242 = vector.shape_cast %241 : vector<1x32xf32> to vector<1x32xf32>
    %243 = vector.broadcast %242 : vector<1x32xf32> to vector<4x32xf32>
    %cst_51 = arith.constant dense<0.000000e+00> : vector<32x128xf32>
    %244 = tpu.matmul %230, %232, %cst_51 {dimension_numbers = #tpu.dot_dimension_numbers<[1], [0], [0], [1], [0, 0, 1, 1], [], []>} : vector<32x32xbf16>, vector<32x128xbf16>, vector<32x128xf32> -> vector<32x128xf32>
    %245 = vector.broadcast %235 : vector<1x128xf32> to vector<32x128xf32>
    %246 = arith.addf %244, %245 : vector<32x128xf32>
    %247 = vector.extract_strided_slice %246 {offsets = [0, 0], sizes = [4, 128], strides = [1, 1]} : vector<32x128xf32> to vector<4x128xf32>
    %248 = arith.truncf %221 : vector<4x32xf32> to vector<4x32xbf16>
    %cst_52 = arith.constant dense<0.000000e+00> : vector<4x128xf32>
    %249 = tpu.matmul %248, %234, %cst_52 {dimension_numbers = #tpu.dot_dimension_numbers<[1], [0], [0], [1], [0, 0, 1, 1], [], []>} : vector<4x32xbf16>, vector<32x128xbf16>, vector<4x128xf32> -> vector<4x128xf32>
    %250 = arith.addf %247, %249 : vector<4x128xf32>
    %251 = arith.negf %250 : vector<4x128xf32>
    %252 = math.exp %251 : vector<4x128xf32>
    %cst_53 = arith.constant 1.000000e+00 : f32
    %253 = vector.broadcast %cst_53 : f32 to vector<4x128xf32>
    %254 = arith.addf %253, %252 : vector<4x128xf32>
    %255 = arith.divf %253, %254 : vector<4x128xf32>
    %256 = math.tanh %250 : vector<4x128xf32>
    %257 = vector.extract_strided_slice %255 {offsets = [0, 0], sizes = [4, 32], strides = [1, 1]} : vector<4x128xf32> to vector<4x32xf32>
    %258 = vector.extract_strided_slice %255 {offsets = [0, 32], sizes = [4, 32], strides = [1, 1]} : vector<4x128xf32> to vector<4x32xf32>
    %259 = vector.extract_strided_slice %256 {offsets = [0, 64], sizes = [4, 32], strides = [1, 1]} : vector<4x128xf32> to vector<4x32xf32>
    %260 = vector.extract_strided_slice %255 {offsets = [0, 96], sizes = [4, 32], strides = [1, 1]} : vector<4x128xf32> to vector<4x32xf32>
    %261 = arith.mulf %258, %219 : vector<4x32xf32>
    %262 = arith.mulf %257, %259 : vector<4x32xf32>
    %263 = arith.addf %261, %262 : vector<4x32xf32>
    %264 = math.tanh %263 : vector<4x32xf32>
    %265 = arith.mulf %260, %264 : vector<4x32xf32>
    %266 = arith.mulf %265, %239 : vector<4x32xf32>
    %267 = arith.addf %266, %243 : vector<4x32xf32>
    %cst_54 = arith.constant 0.000000e+00 : f32
    %268 = vector.broadcast %cst_54 : f32 to vector<4x32xf32>
    %269 = arith.cmpf oge, %267, %268 : vector<4x32xf32>
    %cst_55 = arith.constant 0.00999999977 : f32
    %270 = vector.broadcast %cst_55 : f32 to vector<4x32xf32>
    %271 = arith.mulf %270, %267 : vector<4x32xf32>
    %272 = arith.select %269, %267, %271 : vector<4x32xi1>, vector<4x32xf32>
    %273 = vector.extract_strided_slice %246 {offsets = [4, 0], sizes = [4, 128], strides = [1, 1]} : vector<32x128xf32> to vector<4x128xf32>
    %274 = arith.truncf %265 : vector<4x32xf32> to vector<4x32xbf16>
    %cst_56 = arith.constant dense<0.000000e+00> : vector<4x128xf32>
    %275 = tpu.matmul %274, %234, %cst_56 {dimension_numbers = #tpu.dot_dimension_numbers<[1], [0], [0], [1], [0, 0, 1, 1], [], []>} : vector<4x32xbf16>, vector<32x128xbf16>, vector<4x128xf32> -> vector<4x128xf32>
    %276 = arith.addf %273, %275 : vector<4x128xf32>
    %277 = arith.negf %276 : vector<4x128xf32>
    %278 = math.exp %277 : vector<4x128xf32>
    %cst_57 = arith.constant 1.000000e+00 : f32
    %279 = vector.broadcast %cst_57 : f32 to vector<4x128xf32>
    %280 = arith.addf %279, %278 : vector<4x128xf32>
    %281 = arith.divf %279, %280 : vector<4x128xf32>
    %282 = math.tanh %276 : vector<4x128xf32>
    %283 = vector.extract_strided_slice %281 {offsets = [0, 0], sizes = [4, 32], strides = [1, 1]} : vector<4x128xf32> to vector<4x32xf32>
    %284 = vector.extract_strided_slice %281 {offsets = [0, 32], sizes = [4, 32], strides = [1, 1]} : vector<4x128xf32> to vector<4x32xf32>
    %285 = vector.extract_strided_slice %282 {offsets = [0, 64], sizes = [4, 32], strides = [1, 1]} : vector<4x128xf32> to vector<4x32xf32>
    %286 = vector.extract_strided_slice %281 {offsets = [0, 96], sizes = [4, 32], strides = [1, 1]} : vector<4x128xf32> to vector<4x32xf32>
    %287 = arith.mulf %284, %263 : vector<4x32xf32>
    %288 = arith.mulf %283, %285 : vector<4x32xf32>
    %289 = arith.addf %287, %288 : vector<4x32xf32>
    %290 = math.tanh %289 : vector<4x32xf32>
    %291 = arith.mulf %286, %290 : vector<4x32xf32>
    %292 = arith.mulf %291, %239 : vector<4x32xf32>
    %293 = arith.addf %292, %243 : vector<4x32xf32>
    %cst_58 = arith.constant 0.000000e+00 : f32
    %294 = vector.broadcast %cst_58 : f32 to vector<4x32xf32>
    %295 = arith.cmpf oge, %293, %294 : vector<4x32xf32>
    %cst_59 = arith.constant 0.00999999977 : f32
    %296 = vector.broadcast %cst_59 : f32 to vector<4x32xf32>
    %297 = arith.mulf %296, %293 : vector<4x32xf32>
    %298 = arith.select %295, %293, %297 : vector<4x32xi1>, vector<4x32xf32>
    %299 = vector.extract_strided_slice %246 {offsets = [8, 0], sizes = [4, 128], strides = [1, 1]} : vector<32x128xf32> to vector<4x128xf32>
    %300 = arith.truncf %291 : vector<4x32xf32> to vector<4x32xbf16>
    %cst_60 = arith.constant dense<0.000000e+00> : vector<4x128xf32>
    %301 = tpu.matmul %300, %234, %cst_60 {dimension_numbers = #tpu.dot_dimension_numbers<[1], [0], [0], [1], [0, 0, 1, 1], [], []>} : vector<4x32xbf16>, vector<32x128xbf16>, vector<4x128xf32> -> vector<4x128xf32>
    %302 = arith.addf %299, %301 : vector<4x128xf32>
    %303 = arith.negf %302 : vector<4x128xf32>
    %304 = math.exp %303 : vector<4x128xf32>
    %cst_61 = arith.constant 1.000000e+00 : f32
    %305 = vector.broadcast %cst_61 : f32 to vector<4x128xf32>
    %306 = arith.addf %305, %304 : vector<4x128xf32>
    %307 = arith.divf %305, %306 : vector<4x128xf32>
    %308 = math.tanh %302 : vector<4x128xf32>
    %309 = vector.extract_strided_slice %307 {offsets = [0, 0], sizes = [4, 32], strides = [1, 1]} : vector<4x128xf32> to vector<4x32xf32>
    %310 = vector.extract_strided_slice %307 {offsets = [0, 32], sizes = [4, 32], strides = [1, 1]} : vector<4x128xf32> to vector<4x32xf32>
    %311 = vector.extract_strided_slice %308 {offsets = [0, 64], sizes = [4, 32], strides = [1, 1]} : vector<4x128xf32> to vector<4x32xf32>
    %312 = vector.extract_strided_slice %307 {offsets = [0, 96], sizes = [4, 32], strides = [1, 1]} : vector<4x128xf32> to vector<4x32xf32>
    %313 = arith.mulf %310, %289 : vector<4x32xf32>
    %314 = arith.mulf %309, %311 : vector<4x32xf32>
    %315 = arith.addf %313, %314 : vector<4x32xf32>
    %316 = math.tanh %315 : vector<4x32xf32>
    %317 = arith.mulf %312, %316 : vector<4x32xf32>
    %318 = arith.mulf %317, %239 : vector<4x32xf32>
    %319 = arith.addf %318, %243 : vector<4x32xf32>
    %cst_62 = arith.constant 0.000000e+00 : f32
    %320 = vector.broadcast %cst_62 : f32 to vector<4x32xf32>
    %321 = arith.cmpf oge, %319, %320 : vector<4x32xf32>
    %cst_63 = arith.constant 0.00999999977 : f32
    %322 = vector.broadcast %cst_63 : f32 to vector<4x32xf32>
    %323 = arith.mulf %322, %319 : vector<4x32xf32>
    %324 = arith.select %321, %319, %323 : vector<4x32xi1>, vector<4x32xf32>
    %325 = vector.extract_strided_slice %246 {offsets = [12, 0], sizes = [4, 128], strides = [1, 1]} : vector<32x128xf32> to vector<4x128xf32>
    %326 = arith.truncf %317 : vector<4x32xf32> to vector<4x32xbf16>
    %cst_64 = arith.constant dense<0.000000e+00> : vector<4x128xf32>
    %327 = tpu.matmul %326, %234, %cst_64 {dimension_numbers = #tpu.dot_dimension_numbers<[1], [0], [0], [1], [0, 0, 1, 1], [], []>} : vector<4x32xbf16>, vector<32x128xbf16>, vector<4x128xf32> -> vector<4x128xf32>
    %328 = arith.addf %325, %327 : vector<4x128xf32>
    %329 = arith.negf %328 : vector<4x128xf32>
    %330 = math.exp %329 : vector<4x128xf32>
    %cst_65 = arith.constant 1.000000e+00 : f32
    %331 = vector.broadcast %cst_65 : f32 to vector<4x128xf32>
    %332 = arith.addf %331, %330 : vector<4x128xf32>
    %333 = arith.divf %331, %332 : vector<4x128xf32>
    %334 = math.tanh %328 : vector<4x128xf32>
    %335 = vector.extract_strided_slice %333 {offsets = [0, 0], sizes = [4, 32], strides = [1, 1]} : vector<4x128xf32> to vector<4x32xf32>
    %336 = vector.extract_strided_slice %333 {offsets = [0, 32], sizes = [4, 32], strides = [1, 1]} : vector<4x128xf32> to vector<4x32xf32>
    %337 = vector.extract_strided_slice %334 {offsets = [0, 64], sizes = [4, 32], strides = [1, 1]} : vector<4x128xf32> to vector<4x32xf32>
    %338 = vector.extract_strided_slice %333 {offsets = [0, 96], sizes = [4, 32], strides = [1, 1]} : vector<4x128xf32> to vector<4x32xf32>
    %339 = arith.mulf %336, %315 : vector<4x32xf32>
    %340 = arith.mulf %335, %337 : vector<4x32xf32>
    %341 = arith.addf %339, %340 : vector<4x32xf32>
    %342 = math.tanh %341 : vector<4x32xf32>
    %343 = arith.mulf %338, %342 : vector<4x32xf32>
    %344 = arith.mulf %343, %239 : vector<4x32xf32>
    %345 = arith.addf %344, %243 : vector<4x32xf32>
    %cst_66 = arith.constant 0.000000e+00 : f32
    %346 = vector.broadcast %cst_66 : f32 to vector<4x32xf32>
    %347 = arith.cmpf oge, %345, %346 : vector<4x32xf32>
    %cst_67 = arith.constant 0.00999999977 : f32
    %348 = vector.broadcast %cst_67 : f32 to vector<4x32xf32>
    %349 = arith.mulf %348, %345 : vector<4x32xf32>
    %350 = arith.select %347, %345, %349 : vector<4x32xi1>, vector<4x32xf32>
    %351 = vector.extract_strided_slice %246 {offsets = [16, 0], sizes = [4, 128], strides = [1, 1]} : vector<32x128xf32> to vector<4x128xf32>
    %352 = arith.truncf %343 : vector<4x32xf32> to vector<4x32xbf16>
    %cst_68 = arith.constant dense<0.000000e+00> : vector<4x128xf32>
    %353 = tpu.matmul %352, %234, %cst_68 {dimension_numbers = #tpu.dot_dimension_numbers<[1], [0], [0], [1], [0, 0, 1, 1], [], []>} : vector<4x32xbf16>, vector<32x128xbf16>, vector<4x128xf32> -> vector<4x128xf32>
    %354 = arith.addf %351, %353 : vector<4x128xf32>
    %355 = arith.negf %354 : vector<4x128xf32>
    %356 = math.exp %355 : vector<4x128xf32>
    %cst_69 = arith.constant 1.000000e+00 : f32
    %357 = vector.broadcast %cst_69 : f32 to vector<4x128xf32>
    %358 = arith.addf %357, %356 : vector<4x128xf32>
    %359 = arith.divf %357, %358 : vector<4x128xf32>
    %360 = math.tanh %354 : vector<4x128xf32>
    %361 = vector.extract_strided_slice %359 {offsets = [0, 0], sizes = [4, 32], strides = [1, 1]} : vector<4x128xf32> to vector<4x32xf32>
    %362 = vector.extract_strided_slice %359 {offsets = [0, 32], sizes = [4, 32], strides = [1, 1]} : vector<4x128xf32> to vector<4x32xf32>
    %363 = vector.extract_strided_slice %360 {offsets = [0, 64], sizes = [4, 32], strides = [1, 1]} : vector<4x128xf32> to vector<4x32xf32>
    %364 = vector.extract_strided_slice %359 {offsets = [0, 96], sizes = [4, 32], strides = [1, 1]} : vector<4x128xf32> to vector<4x32xf32>
    %365 = arith.mulf %362, %341 : vector<4x32xf32>
    %366 = arith.mulf %361, %363 : vector<4x32xf32>
    %367 = arith.addf %365, %366 : vector<4x32xf32>
    %368 = math.tanh %367 : vector<4x32xf32>
    %369 = arith.mulf %364, %368 : vector<4x32xf32>
    %370 = arith.mulf %369, %239 : vector<4x32xf32>
    %371 = arith.addf %370, %243 : vector<4x32xf32>
    %cst_70 = arith.constant 0.000000e+00 : f32
    %372 = vector.broadcast %cst_70 : f32 to vector<4x32xf32>
    %373 = arith.cmpf oge, %371, %372 : vector<4x32xf32>
    %cst_71 = arith.constant 0.00999999977 : f32
    %374 = vector.broadcast %cst_71 : f32 to vector<4x32xf32>
    %375 = arith.mulf %374, %371 : vector<4x32xf32>
    %376 = arith.select %373, %371, %375 : vector<4x32xi1>, vector<4x32xf32>
    %377 = vector.extract_strided_slice %246 {offsets = [20, 0], sizes = [4, 128], strides = [1, 1]} : vector<32x128xf32> to vector<4x128xf32>
    %378 = arith.truncf %369 : vector<4x32xf32> to vector<4x32xbf16>
    %cst_72 = arith.constant dense<0.000000e+00> : vector<4x128xf32>
    %379 = tpu.matmul %378, %234, %cst_72 {dimension_numbers = #tpu.dot_dimension_numbers<[1], [0], [0], [1], [0, 0, 1, 1], [], []>} : vector<4x32xbf16>, vector<32x128xbf16>, vector<4x128xf32> -> vector<4x128xf32>
    %380 = arith.addf %377, %379 : vector<4x128xf32>
    %381 = arith.negf %380 : vector<4x128xf32>
    %382 = math.exp %381 : vector<4x128xf32>
    %cst_73 = arith.constant 1.000000e+00 : f32
    %383 = vector.broadcast %cst_73 : f32 to vector<4x128xf32>
    %384 = arith.addf %383, %382 : vector<4x128xf32>
    %385 = arith.divf %383, %384 : vector<4x128xf32>
    %386 = math.tanh %380 : vector<4x128xf32>
    %387 = vector.extract_strided_slice %385 {offsets = [0, 0], sizes = [4, 32], strides = [1, 1]} : vector<4x128xf32> to vector<4x32xf32>
    %388 = vector.extract_strided_slice %385 {offsets = [0, 32], sizes = [4, 32], strides = [1, 1]} : vector<4x128xf32> to vector<4x32xf32>
    %389 = vector.extract_strided_slice %386 {offsets = [0, 64], sizes = [4, 32], strides = [1, 1]} : vector<4x128xf32> to vector<4x32xf32>
    %390 = vector.extract_strided_slice %385 {offsets = [0, 96], sizes = [4, 32], strides = [1, 1]} : vector<4x128xf32> to vector<4x32xf32>
    %391 = arith.mulf %388, %367 : vector<4x32xf32>
    %392 = arith.mulf %387, %389 : vector<4x32xf32>
    %393 = arith.addf %391, %392 : vector<4x32xf32>
    %394 = math.tanh %393 : vector<4x32xf32>
    %395 = arith.mulf %390, %394 : vector<4x32xf32>
    %396 = arith.mulf %395, %239 : vector<4x32xf32>
    %397 = arith.addf %396, %243 : vector<4x32xf32>
    %cst_74 = arith.constant 0.000000e+00 : f32
    %398 = vector.broadcast %cst_74 : f32 to vector<4x32xf32>
    %399 = arith.cmpf oge, %397, %398 : vector<4x32xf32>
    %cst_75 = arith.constant 0.00999999977 : f32
    %400 = vector.broadcast %cst_75 : f32 to vector<4x32xf32>
    %401 = arith.mulf %400, %397 : vector<4x32xf32>
    %402 = arith.select %399, %397, %401 : vector<4x32xi1>, vector<4x32xf32>
    %403 = vector.extract_strided_slice %246 {offsets = [24, 0], sizes = [4, 128], strides = [1, 1]} : vector<32x128xf32> to vector<4x128xf32>
    %404 = arith.truncf %395 : vector<4x32xf32> to vector<4x32xbf16>
    %cst_76 = arith.constant dense<0.000000e+00> : vector<4x128xf32>
    %405 = tpu.matmul %404, %234, %cst_76 {dimension_numbers = #tpu.dot_dimension_numbers<[1], [0], [0], [1], [0, 0, 1, 1], [], []>} : vector<4x32xbf16>, vector<32x128xbf16>, vector<4x128xf32> -> vector<4x128xf32>
    %406 = arith.addf %403, %405 : vector<4x128xf32>
    %407 = arith.negf %406 : vector<4x128xf32>
    %408 = math.exp %407 : vector<4x128xf32>
    %cst_77 = arith.constant 1.000000e+00 : f32
    %409 = vector.broadcast %cst_77 : f32 to vector<4x128xf32>
    %410 = arith.addf %409, %408 : vector<4x128xf32>
    %411 = arith.divf %409, %410 : vector<4x128xf32>
    %412 = math.tanh %406 : vector<4x128xf32>
    %413 = vector.extract_strided_slice %411 {offsets = [0, 0], sizes = [4, 32], strides = [1, 1]} : vector<4x128xf32> to vector<4x32xf32>
    %414 = vector.extract_strided_slice %411 {offsets = [0, 32], sizes = [4, 32], strides = [1, 1]} : vector<4x128xf32> to vector<4x32xf32>
    %415 = vector.extract_strided_slice %412 {offsets = [0, 64], sizes = [4, 32], strides = [1, 1]} : vector<4x128xf32> to vector<4x32xf32>
    %416 = vector.extract_strided_slice %411 {offsets = [0, 96], sizes = [4, 32], strides = [1, 1]} : vector<4x128xf32> to vector<4x32xf32>
    %417 = arith.mulf %414, %393 : vector<4x32xf32>
    %418 = arith.mulf %413, %415 : vector<4x32xf32>
    %419 = arith.addf %417, %418 : vector<4x32xf32>
    %420 = math.tanh %419 : vector<4x32xf32>
    %421 = arith.mulf %416, %420 : vector<4x32xf32>
    %422 = arith.mulf %421, %239 : vector<4x32xf32>
    %423 = arith.addf %422, %243 : vector<4x32xf32>
    %cst_78 = arith.constant 0.000000e+00 : f32
    %424 = vector.broadcast %cst_78 : f32 to vector<4x32xf32>
    %425 = arith.cmpf oge, %423, %424 : vector<4x32xf32>
    %cst_79 = arith.constant 0.00999999977 : f32
    %426 = vector.broadcast %cst_79 : f32 to vector<4x32xf32>
    %427 = arith.mulf %426, %423 : vector<4x32xf32>
    %428 = arith.select %425, %423, %427 : vector<4x32xi1>, vector<4x32xf32>
    %429 = vector.extract_strided_slice %246 {offsets = [28, 0], sizes = [4, 128], strides = [1, 1]} : vector<32x128xf32> to vector<4x128xf32>
    %430 = arith.truncf %421 : vector<4x32xf32> to vector<4x32xbf16>
    %cst_80 = arith.constant dense<0.000000e+00> : vector<4x128xf32>
    %431 = tpu.matmul %430, %234, %cst_80 {dimension_numbers = #tpu.dot_dimension_numbers<[1], [0], [0], [1], [0, 0, 1, 1], [], []>} : vector<4x32xbf16>, vector<32x128xbf16>, vector<4x128xf32> -> vector<4x128xf32>
    %432 = arith.addf %429, %431 : vector<4x128xf32>
    %433 = arith.negf %432 : vector<4x128xf32>
    %434 = math.exp %433 : vector<4x128xf32>
    %cst_81 = arith.constant 1.000000e+00 : f32
    %435 = vector.broadcast %cst_81 : f32 to vector<4x128xf32>
    %436 = arith.addf %435, %434 : vector<4x128xf32>
    %437 = arith.divf %435, %436 : vector<4x128xf32>
    %438 = math.tanh %432 : vector<4x128xf32>
    %439 = vector.extract_strided_slice %437 {offsets = [0, 0], sizes = [4, 32], strides = [1, 1]} : vector<4x128xf32> to vector<4x32xf32>
    %440 = vector.extract_strided_slice %437 {offsets = [0, 32], sizes = [4, 32], strides = [1, 1]} : vector<4x128xf32> to vector<4x32xf32>
    %441 = vector.extract_strided_slice %438 {offsets = [0, 64], sizes = [4, 32], strides = [1, 1]} : vector<4x128xf32> to vector<4x32xf32>
    %442 = vector.extract_strided_slice %437 {offsets = [0, 96], sizes = [4, 32], strides = [1, 1]} : vector<4x128xf32> to vector<4x32xf32>
    %443 = arith.mulf %440, %419 : vector<4x32xf32>
    %444 = arith.mulf %439, %441 : vector<4x32xf32>
    %445 = arith.addf %443, %444 : vector<4x32xf32>
    %446 = math.tanh %445 : vector<4x32xf32>
    %447 = arith.mulf %442, %446 : vector<4x32xf32>
    %448 = arith.mulf %447, %239 : vector<4x32xf32>
    %449 = arith.addf %448, %243 : vector<4x32xf32>
    %cst_82 = arith.constant 0.000000e+00 : f32
    %450 = vector.broadcast %cst_82 : f32 to vector<4x32xf32>
    %451 = arith.cmpf oge, %449, %450 : vector<4x32xf32>
    %cst_83 = arith.constant 0.00999999977 : f32
    %452 = vector.broadcast %cst_83 : f32 to vector<4x32xf32>
    %453 = arith.mulf %452, %449 : vector<4x32xf32>
    %454 = arith.select %451, %449, %453 : vector<4x32xi1>, vector<4x32xf32>
    %455 = tpu.concatenate %272, %298, %324, %350, %376, %402, %428, %454 in 1 : vector<4x32xf32>, vector<4x32xf32>, vector<4x32xf32>, vector<4x32xf32>, vector<4x32xf32>, vector<4x32xf32>, vector<4x32xf32>, vector<4x32xf32> -> vector<4x256xf32>
    %456 = arith.truncf %455 : vector<4x256xf32> to vector<4x256xbf16>
    %c0_84 = arith.constant 0 : index
    %c0_85 = arith.constant 0 : index
    %457 = vector.load %arg5[%c0_84, %c0_85] : memref<256x8xbf16, #tpu.memory_space<vmem>>, vector<256x8xbf16>
    %cst_86 = arith.constant dense<0.000000e+00> : vector<4x8xf32>
    %458 = tpu.matmul %456, %457, %cst_86 {dimension_numbers = #tpu.dot_dimension_numbers<[1], [0], [0], [1], [0, 0, 1, 1], [], []>} : vector<4x256xbf16>, vector<256x8xbf16>, vector<4x8xf32> -> vector<4x8xf32>
    %c0_87 = arith.constant 0 : index
    %c0_88 = arith.constant 0 : index
    %459 = vector.load %arg6[%c0_87, %c0_88] : memref<1x8xf32, #tpu.memory_space<vmem>>, vector<1x8xf32>
    %460 = vector.broadcast %459 : vector<1x8xf32> to vector<4x8xf32>
    %461 = arith.addf %458, %460 : vector<4x8xf32>
    %cst_89 = arith.constant 0.000000e+00 : f32
    %462 = vector.broadcast %cst_89 : f32 to vector<4x8xf32>
    %463 = arith.maximumf %461, %462 : vector<4x8xf32>
    %c0_90 = arith.constant 0 : index
    %c0_91 = arith.constant 0 : index
    %464 = vector.load %arg7[%c0_90, %c0_91] : memref<2x8xf32, #tpu.memory_space<vmem>>, vector<2x8xf32>
    %465 = vector.extract_strided_slice %464 {offsets = [0, 0], sizes = [1, 8], strides = [1, 1]} : vector<2x8xf32> to vector<1x8xf32>
    %466 = vector.broadcast %465 : vector<1x8xf32> to vector<4x8xf32>
    %467 = arith.mulf %463, %466 : vector<4x8xf32>
    %468 = vector.extract_strided_slice %464 {offsets = [1, 0], sizes = [1, 8], strides = [1, 1]} : vector<2x8xf32> to vector<1x8xf32>
    %469 = vector.broadcast %468 : vector<1x8xf32> to vector<4x8xf32>
    %470 = arith.addf %467, %469 : vector<4x8xf32>
    %cst_92 = arith.constant dense<0xFF800000> : vector<4xf32>
    %471 = vector.multi_reduction <maximumf>, %470, %cst_92 [1] : vector<4x8xf32> to vector<4xf32>
    %472 = vector.shape_cast %471 : vector<4xf32> to vector<4x1xf32>
    %473 = vector.broadcast %472 : vector<4x1xf32> to vector<4x8xf32>
    %474 = arith.subf %470, %473 : vector<4x8xf32>
    %475 = math.exp %474 : vector<4x8xf32>
    %cst_93 = arith.constant dense<0.000000e+00> : vector<4xf32>
    %476 = vector.multi_reduction <add>, %475, %cst_93 [1] : vector<4x8xf32> to vector<4xf32>
    %477 = vector.shape_cast %476 : vector<4xf32> to vector<4x1xf32>
    %478 = tpu.reciprocal %477 {approx = true} : vector<4x1xf32> -> vector<4x1xf32>
    %479 = vector.broadcast %478 : vector<4x1xf32> to vector<4x8xf32>
    %480 = arith.mulf %475, %479 : vector<4x8xf32>
    %c0_94 = arith.constant 0 : index
    %c0_95 = arith.constant 0 : index
    %481 = vector.load %arg8[%c0_94, %c0_95] : memref<4x8xf32, #tpu.memory_space<vmem>>, vector<4x8xf32>
    tpu.vector_store %arg8[%c0_94, %c0_95], %480 {strides = array<i32>} : memref<4x8xf32, #tpu.memory_space<vmem>>, vector<4x8xf32>,
    return
  }
}

</mosaic_0001>

<llo_original>
// kernel: forward.1
$region0: #{forward.1}
  #allocation0 [shape = 'u32[]', space=smem, size = 0x4, offset = 0x4, fixed_abs, tag = 'smem constant byte address 0x4 - core index']
  #allocation1 [shape = 'u32[72,128]{1,0:T(1,128)}', space=vmem, size = 0x9000, scoped, tag = 'internal scratch']
  %s0 = inlined_call_operand.vmem [shape: bf16[32,32], index: 0, kind: input, shape index: {}]
  %s1 = inlined_call_operand.vmem [shape: bf16[2,32,128], index: 1, kind: input, shape index: {}]
  %s2 = inlined_call_operand.vmem [shape: bf16[2,32,128], index: 2, kind: input, shape index: {}]
  %s3 = inlined_call_operand.vmem [shape: f32[2,128], index: 3, kind: input, shape index: {}]
  %s4 = inlined_call_operand.vmem [shape: f32[2,2,32], index: 4, kind: input, shape index: {}]
  %s5 = inlined_call_operand.vmem [shape: bf16[256,8], index: 5, kind: input, shape index: {}]
  %s6 = inlined_call_operand.vmem [shape: f32[1,8], index: 6, kind: input, shape index: {}]
  %s7 = inlined_call_operand.vmem [shape: f32[2,8], index: 7, kind: input, shape index: {}]
  %s8 = inlined_call_operand.hbm [shape: f32[4,8], index: 8, kind: output, shape index: {}]
  %s9 = sld [smem:[#allocation0]]
  $region42: #{forward.1} parent=0
    _
  %s11 = ssub.s32 1, %s9
  %s12 = scalar_select 0, %s11, %s9
  $region1: #{forward.1} parent=0
    #allocation2 [shape = 'u8[2048]{0}', space=vmem, size = 0x800, scoped, tag = 'output window, operand 0, single buffered']
    #allocation3 [shape = 's32[1]{0}', space=sflag, size = 0x4, scoped, tag = 'scoped memory for forward.1']
    %13 = vsyncpa [#allocation3], 0
    // Predicated region
    $region2: #{forward.1} parent=1 // pred_check
      _
    $region3: #{forward.1} parent=1 // pred_check_branch
      %15 = sbr.rel (0) target = $region5
    $region4: #{forward.1} parent=1 // pred_region
      _
    $region5: #{forward.1} parent=1 // pred_fallthru
      _
    // Predicated region
    $region6: #{forward.1} parent=1 // pred_check
      _
    $region7: #{forward.1} parent=1 // pred_check_branch
      %17 = sbr.rel (0) target = $region9
    $region8: #{forward.1} parent=1 // pred_region
      _
    $region9: #{forward.1} parent=1 // pred_fallthru
      _
    // Predicated region
    $region10: #{forward.1} parent=1 // pred_check
      _
    $region11: #{forward.1} parent=1 // pred_check_branch
      %19 = sbr.rel (0) target = $region13
    $region12: #{forward.1} parent=1 // pred_region
      _
    $region13: #{forward.1} parent=1 // pred_fallthru
      _
    // Predicated region
    $region14: #{forward.1} parent=1 // pred_check
      _
    $region15: #{forward.1} parent=1 // pred_check_branch
      %21 = sbr.rel (0) target = $region17
    $region16: #{forward.1} parent=1 // pred_region
      _
    $region17: #{forward.1} parent=1 // pred_fallthru
      _
    // Predicated region
    $region18: #{forward.1} parent=1 // pred_check
      _
    $region19: #{forward.1} parent=1 // pred_check_branch
      %23 = sbr.rel (0) target = $region21
    $region20: #{forward.1} parent=1 // pred_region
      _
    $region21: #{forward.1} parent=1 // pred_fallthru
      _
    // Predicated region
    $region22: #{forward.1} parent=1 // pred_check
      _
    $region23: #{forward.1} parent=1 // pred_check_branch
      %25 = sbr.rel (0) target = $region25
    $region24: #{forward.1} parent=1 // pred_region
      _
    $region25: #{forward.1} parent=1 // pred_fallthru
      _
    // Predicated region
    $region26: #{forward.1} parent=1 // pred_check
      _
    $region27: #{forward.1} parent=1 // pred_check_branch
      %27 = sbr.rel (0) target = $region29
    $region28: #{forward.1} parent=1 // pred_region
      _
    $region29: #{forward.1} parent=1 // pred_fallthru
      _
    // Predicated region
    $region30: #{forward.1} parent=1 // pred_check
      _
    $region31: #{forward.1} parent=1 // pred_check_branch
      %29 = sbr.rel (0) target = $region33
    $region32: #{forward.1} parent=1 // pred_region
      _
    $region33: #{forward.1} parent=1 // pred_fallthru
      _
    %v31 = vld [vmem:[%s3] sm:$0x3]
    %v32 = vld [vmem:[%s4] sm:$0x3]
    %v33 = vld [vmem:[%s4 + $0x2] sm:$0x3]
    %v34 = vld [vmem:[%s0] sm:$0xf]
    %v35 = vld [vmem:[%s0 + $0x4] sm:$0xf]
    %v36 = vld [vmem:[%s0 + $0x8] sm:$0xf]
    %v37 = vld [vmem:[%s0 + $0xc] sm:$0xf]
    %v38 = vld [vmem:[%s1] sm:$0xf]
    %v39 = vld [vmem:[%s1 + $0x4] sm:$0xf]
    %v40 = vld [vmem:[%s1 + $0x8] sm:$0xf]
    %v41 = vld [vmem:[%s1 + $0xc] sm:$0xf]
    %v42 = vld [vmem:[%s2] sm:$0xf]
    %v43 = vld [vmem:[%s2 + $0x4] sm:$0xf]
    %v44 = vld [vmem:[%s2 + $0x8] sm:$0xf]
    %v45 = vld [vmem:[%s2 + $0xc] sm:$0xf]
    %v46 = vperm.slane %v32, 0
    %v47 = vperm.slane %v32, 1
    %v48 = vperm.slane %v31, 0
    %v53 = vunpack.c.l.b16 %v34
    %v54 = vunpack.c.l.b16 %v35
    %v55 = vunpack.c.l.b16 %v36
    %v56 = vunpack.c.l.b16 %v37
    %v57 = vpack.c.b16 %v54, %v53
    %v58 = vpack.c.b16 %v56, %v55
    %v63 = vunpack.c.l.b16 %v38
    %v64 = vunpack.c.l.b16 %v39
    %v65 = vunpack.c.l.b16 %v40
    %v66 = vunpack.c.l.b16 %v41
    %v67 = vpack.c.b16 %v64, %v63
    %v68 = vpack.c.b16 %v66, %v65
    %vm71 = vcmask 261120
    %v73 = vsel %vm71, %v57, 0
    %v76 = vsel %vm71, %v58, 0
    %78 = vmatpush.bf16.msra.mxu0 0
    %79 = vmatpush.bf16.msra.mxu0 0
    %80 = vmatpush.bf16.msra.mxu0 0
    %81 = vmatpush.bf16.msra.mxu0 0
    %82 = vmatpush.bf16.msra.mxu0 0
    %83 = vmatpush.bf16.msra.mxu0 0
    %84 = vmatpush.bf16.msra.mxu0 %v68
    %85 = vmatpush.bf16.msra.mxu0 %v67
    %86 = vmatmul.bf16.gmra.mxu0 %v73
    %v87 = vpop.f32.mrf.mxu0
    %v88 = vadd.f32 %v48, %v87
    %v89 = vpop.f32.mrf.mxu0
    %v90 = vadd.f32 %v48, %v89
    %91 = vmatmul.bf16.gmra.mxu0 %v76
    %v92 = vpop.f32.mrf.mxu0
    %v93 = vadd.f32 %v48, %v92
    %v94 = vpop.f32.mrf.mxu0
    %v95 = vadd.f32 %v48, %v94
    %96 = vdwg.mxu0
    %v101 = vunpack.c.l.b16 %v42
    %v102 = vunpack.c.l.b16 %v43
    %v103 = vunpack.c.l.b16 %v44
    %v104 = vunpack.c.l.b16 %v45
    %v105 = vpack.c.b16 %v102, %v101
    %v106 = vpack.c.b16 %v104, %v103
    %v110 = vsel %vm71, 0, 0
    %112 = vmatpush.bf16.msra.mxu0 0
    %113 = vmatpush.bf16.msra.mxu0 0
    %114 = vmatpush.bf16.msra.mxu0 0
    %115 = vmatpush.bf16.msra.mxu0 0
    %116 = vmatpush.bf16.msra.mxu0 0
    %117 = vmatpush.bf16.msra.mxu0 0
    %118 = vmatpush.bf16.msra.mxu0 %v106
    %119 = vmatpush.bf16.msra.mxu0 %v105
    %120 = vmatmul.bf16.gmra.mxu0 %v110
    %v121 = vpop.f32.mrf.mxu0
    %v122 = vadd.f32 0.0, %v121
    %v123 = vpop.f32.mrf.mxu0
    %124 = vdwg.mxu0
    %v125 = vadd.f32 %v88, %v122
    %v126 = vxor.u32 %v125, 2147483648
    %v127 = vmul.f32 %v126, 1.442695
    %v128 = vpow.pop %v127
    %v129 = vadd.f32 %v128, 1.0
    %v130 = vrcp.pop %v129
    %v131 = vmul.f32 %v129, %v130
    %v132 = vsub.f32 1.0, %v131
    %v133 = vmul.f32 %v130, %v132
    %v134 = vadd.f32 %v130, %v133
    %vm135 = vweird.f32 %v129
    %vm136 = vweird.f32 %v130
    %vm137 = vmor %vm135, %vm136
    %v138 = vsel %vm137, %v130, %v134
    %v139 = vand.u32 2147483647, %v129
    %vm140 = vcmp.eq.f32.partialorder %v139, 8.507059e+37
    %v141 = vand.u32 %v129, 2147483648
    %v142 = vor.u32 1.1754944e-38, %v141
    %v143 = vsel %vm140, %v142, %v138
    %v144 = vmul.f32 1.0, %v143
    %v145 = vtanh.pop %v125
    %v146 = vmul.f32 %v144, 0.0
    %148 = vrot.lane.b32.xlu0 %v145, 64
    %v149 = vpop.permute.xlu0 %148
    %v151 = vmul.f32 %v144, %v149
    %153 = vrot.lane.b32.xlu0 %v151, 32
    %v154 = vpop.permute.xlu0 %153
    %v156 = vadd.f32 %v146, %v154
    %v157 = vtanh.pop %v156
    %159 = vrot.lane.b32.xlu0 %v157, 64
    %v160 = vpop.permute.xlu0 %159
    %v162 = vmul.f32 %v144, %v160
    %164 = vrot.lane.b32.xlu0 %v46, 96
    %v165 = vpop.permute.xlu0 %164
    %v167 = vmul.f32 %v162, %v165
    %169 = vrot.lane.b32.xlu0 %v47, 96
    %v170 = vpop.permute.xlu0 %169
    %v172 = vadd.f32 %v167, %v170
    %vm173 = vcmp.ge.f32.partialorder %v172, 0.0
    %v174 = vmul.f32 %v172, 0.01
    %v175 = vsel %vm173, %v172, %v174
    %v176 = vpack.c.bf16 %v162, %v162
    %178 = vrot.lane.b32.xlu0 %v176, 32
    %v179 = vpop.permute.xlu0 %178
    %v181 = vsel %vm71, %v179, 0
    %183 = vmatpush.bf16.msra.mxu0 0
    %184 = vmatpush.bf16.msra.mxu0 0
    %185 = vmatpush.bf16.msra.mxu0 0
    %186 = vmatpush.bf16.msra.mxu0 0
    %187 = vmatpush.bf16.msra.mxu0 0
    %188 = vmatpush.bf16.msra.mxu0 0
    %189 = vmatpush.bf16.msra.mxu0 %v106
    %190 = vmatpush.bf16.msra.mxu0 %v105
    %191 = vmatmul.bf16.gmra.mxu0 %v181
    %v192 = vpop.f32.mrf.mxu0
    %v193 = vadd.f32 0.0, %v192
    %v194 = vpop.f32.mrf.mxu0
    %195 = vdwg.mxu0
    %v197 = vrot.slane %v193, 4
    %v199 = vadd.f32 %v88, %v197
    %v200 = vxor.u32 %v199, 2147483648
    %v201 = vmul.f32 %v200, 1.442695
    %v202 = vpow.pop %v201
    %v203 = vadd.f32 %v202, 1.0
    %v204 = vrcp.pop %v203
    %v205 = vmul.f32 %v203, %v204
    %v206 = vsub.f32 1.0, %v205
    %v207 = vmul.f32 %v204, %v206
    %v208 = vadd.f32 %v204, %v207
    %vm209 = vweird.f32 %v203
    %vm210 = vweird.f32 %v204
    %vm211 = vmor %vm209, %vm210
    %v212 = vsel %vm211, %v204, %v208
    %v213 = vand.u32 2147483647, %v203
    %vm214 = vcmp.eq.f32.partialorder %v213, 8.507059e+37
    %v215 = vand.u32 %v203, 2147483648
    %v216 = vor.u32 1.1754944e-38, %v215
    %v217 = vsel %vm214, %v216, %v212
    %v218 = vmul.f32 1.0, %v217
    %v219 = vtanh.pop %v199
    %v221 = vrot.slane %v156, 4
    %v223 = vmul.f32 %v218, %v221
    %225 = vrot.lane.b32.xlu0 %v219, 64
    %v226 = vpop.permute.xlu0 %225
    %v228 = vmul.f32 %v218, %v226
    %230 = vrot.lane.b32.xlu0 %v228, 32
    %v231 = vpop.permute.xlu0 %230
    %v233 = vadd.f32 %v223, %v231
    %v234 = vtanh.pop %v233
    %236 = vrot.lane.b32.xlu0 %v234, 64
    %v237 = vpop.permute.xlu0 %236
    %v239 = vmul.f32 %v218, %v237
    %v240 = vmul.f32 %v239, %v165
    %v241 = vadd.f32 %v240, %v170
    %vm242 = vcmp.ge.f32.partialorder %v241, 0.0
    %v243 = vmul.f32 %v241, 0.01
    %v244 = vsel %vm242, %v241, %v243
    %v245 = vpack.c.bf16 %v239, %v239
    %v247 = vrot.slane %v245, 2
    %248 = vrot.lane.b32.xlu0 %v247, 32
    %v249 = vpop.permute.xlu0 %248
    %v251 = vsel %vm71, %v249, 0
    %253 = vmatpush.bf16.msra.mxu0 0
    %254 = vmatpush.bf16.msra.mxu0 0
    %255 = vmatpush.bf16.msra.mxu0 0
    %256 = vmatpush.bf16.msra.mxu0 0
    %257 = vmatpush.bf16.msra.mxu0 0
    %258 = vmatpush.bf16.msra.mxu0 0
    %259 = vmatpush.bf16.msra.mxu0 %v106
    %260 = vmatpush.bf16.msra.mxu0 %v105
    %261 = vmatmul.bf16.gmra.mxu0 %v251
    %v262 = vpop.f32.mrf.mxu0
    %v263 = vadd.f32 0.0, %v262
    %v264 = vpop.f32.mrf.mxu0
    %265 = vdwg.mxu0
    %v266 = vadd.f32 %v90, %v263
    %v267 = vxor.u32 %v266, 2147483648
    %v268 = vmul.f32 %v267, 1.442695
    %v269 = vpow.pop %v268
    %v270 = vadd.f32 %v269, 1.0
    %v271 = vrcp.pop %v270
    %v272 = vmul.f32 %v270, %v271
    %v273 = vsub.f32 1.0, %v272
    %v274 = vmul.f32 %v271, %v273
    %v275 = vadd.f32 %v271, %v274
    %vm276 = vweird.f32 %v270
    %vm277 = vweird.f32 %v271
    %vm278 = vmor %vm276, %vm277
    %v279 = vsel %vm278, %v271, %v275
    %v280 = vand.u32 2147483647, %v270
    %vm281 = vcmp.eq.f32.partialorder %v280, 8.507059e+37
    %v282 = vand.u32 %v270, 2147483648
    %v283 = vor.u32 1.1754944e-38, %v282
    %v284 = vsel %vm281, %v283, %v279
    %v285 = vmul.f32 1.0, %v284
    %v286 = vtanh.pop %v266
    %v288 = vrot.slane %v233, 4
    %v290 = vmul.f32 %v285, %v288
    %292 = vrot.lane.b32.xlu0 %v286, 64
    %v293 = vpop.permute.xlu0 %292
    %v295 = vmul.f32 %v285, %v293
    %297 = vrot.lane.b32.xlu0 %v295, 32
    %v298 = vpop.permute.xlu0 %297
    %v300 = vadd.f32 %v290, %v298
    %v301 = vtanh.pop %v300
    %303 = vrot.lane.b32.xlu0 %v301, 64
    %v304 = vpop.permute.xlu0 %303
    %v306 = vmul.f32 %v285, %v304
    %v307 = vmul.f32 %v306, %v165
    %v308 = vadd.f32 %v307, %v170
    %vm309 = vcmp.ge.f32.partialorder %v308, 0.0
    %v310 = vmul.f32 %v308, 0.01
    %v311 = vsel %vm309, %v308, %v310
    %v312 = vpack.c.bf16 %v306, %v306
    %314 = vrot.lane.b32.xlu0 %v312, 32
    %v315 = vpop.permute.xlu0 %314
    %v317 = vsel %vm71, %v315, 0
    %319 = vmatpush.bf16.msra.mxu0 0
    %320 = vmatpush.bf16.msra.mxu0 0
    %321 = vmatpush.bf16.msra.mxu0 0
    %322 = vmatpush.bf16.msra.mxu0 0
    %323 = vmatpush.bf16.msra.mxu0 0
    %324 = vmatpush.bf16.msra.mxu0 0
    %325 = vmatpush.bf16.msra.mxu0 %v106
    %326 = vmatpush.bf16.msra.mxu0 %v105
    %327 = vmatmul.bf16.gmra.mxu0 %v317
    %v328 = vpop.f32.mrf.mxu0
    %v329 = vadd.f32 0.0, %v328
    %v330 = vpop.f32.mrf.mxu0
    %331 = vdwg.mxu0
    %v333 = vrot.slane %v329, 4
    %v335 = vadd.f32 %v90, %v333
    %v336 = vxor.u32 %v335, 2147483648
    %v337 = vmul.f32 %v336, 1.442695
    %v338 = vpow.pop %v337
    %v339 = vadd.f32 %v338, 1.0
    %v340 = vrcp.pop %v339
    %v341 = vmul.f32 %v339, %v340
    %v342 = vsub.f32 1.0, %v341
    %v343 = vmul.f32 %v340, %v342
    %v344 = vadd.f32 %v340, %v343
    %vm345 = vweird.f32 %v339
    %vm346 = vweird.f32 %v340
    %vm347 = vmor %vm345, %vm346
    %v348 = vsel %vm347, %v340, %v344
    %v349 = vand.u32 2147483647, %v339
    %vm350 = vcmp.eq.f32.partialorder %v349, 8.507059e+37
    %v351 = vand.u32 %v339, 2147483648
    %v352 = vor.u32 1.1754944e-38, %v351
    %v353 = vsel %vm350, %v352, %v348
    %v354 = vmul.f32 1.0, %v353
    %v355 = vtanh.pop %v335
    %v357 = vrot.slane %v300, 4
    %v359 = vmul.f32 %v354, %v357
    %361 = vrot.lane.b32.xlu0 %v355, 64
    %v362 = vpop.permute.xlu0 %361
    %v364 = vmul.f32 %v354, %v362
    %366 = vrot.lane.b32.xlu0 %v364, 32
    %v367 = vpop.permute.xlu0 %366
    %v369 = vadd.f32 %v359, %v367
    %v370 = vtanh.pop %v369
    %372 = vrot.lane.b32.xlu0 %v370, 64
    %v373 = vpop.permute.xlu0 %372
    %v375 = vmul.f32 %v354, %v373
    %v376 = vmul.f32 %v375, %v165
    %v377 = vadd.f32 %v376, %v170
    %vm378 = vcmp.ge.f32.partialorder %v377, 0.0
    %v379 = vmul.f32 %v377, 0.01
    %v380 = vsel %vm378, %v377, %v379
    %v381 = vpack.c.bf16 %v375, %v375
    %v383 = vrot.slane %v381, 2
    %384 = vrot.lane.b32.xlu0 %v383, 32
    %v385 = vpop.permute.xlu0 %384
    %v387 = vsel %vm71, %v385, 0
    %389 = vmatpush.bf16.msra.mxu0 0
    %390 = vmatpush.bf16.msra.mxu0 0
    %391 = vmatpush.bf16.msra.mxu0 0
    %392 = vmatpush.bf16.msra.mxu0 0
    %393 = vmatpush.bf16.msra.mxu0 0
    %394 = vmatpush.bf16.msra.mxu0 0
    %395 = vmatpush.bf16.msra.mxu0 %v106
    %396 = vmatpush.bf16.msra.mxu0 %v105
    %397 = vmatmul.bf16.gmra.mxu0 %v387
    %v398 = vpop.f32.mrf.mxu0
    %v399 = vadd.f32 0.0, %v398
    %v400 = vpop.f32.mrf.mxu0
    %401 = vdwg.mxu0
    %v402 = vadd.f32 %v93, %v399
    %v403 = vxor.u32 %v402, 2147483648
    %v404 = vmul.f32 %v403, 1.442695
    %v405 = vpow.pop %v404
    %v406 = vadd.f32 %v405, 1.0
    %v407 = vrcp.pop %v406
    %v408 = vmul.f32 %v406, %v407
    %v409 = vsub.f32 1.0, %v408
    %v410 = vmul.f32 %v407, %v409
    %v411 = vadd.f32 %v407, %v410
    %vm412 = vweird.f32 %v406
    %vm413 = vweird.f32 %v407
    %vm414 = vmor %vm412, %vm413
    %v415 = vsel %vm414, %v407, %v411
    %v416 = vand.u32 2147483647, %v406
    %vm417 = vcmp.eq.f32.partialorder %v416, 8.507059e+37
    %v418 = vand.u32 %v406, 2147483648
    %v419 = vor.u32 1.1754944e-38, %v418
    %v420 = vsel %vm417, %v419, %v415
    %v421 = vmul.f32 1.0, %v420
    %v422 = vtanh.pop %v402
    %v424 = vrot.slane %v369, 4
    %v426 = vmul.f32 %v421, %v424
    %428 = vrot.lane.b32.xlu0 %v422, 64
    %v429 = vpop.permute.xlu0 %428
    %v431 = vmul.f32 %v421, %v429
    %433 = vrot.lane.b32.xlu0 %v431, 32
    %v434 = vpop.permute.xlu0 %433
    %v436 = vadd.f32 %v426, %v434
    %v437 = vtanh.pop %v436
    %439 = vrot.lane.b32.xlu0 %v437, 64
    %v440 = vpop.permute.xlu0 %439
    %v442 = vmul.f32 %v421, %v440
    %v443 = vmul.f32 %v442, %v165
    %v444 = vadd.f32 %v443, %v170
    %vm445 = vcmp.ge.f32.partialorder %v444, 0.0
    %v446 = vmul.f32 %v444, 0.01
    %v447 = vsel %vm445, %v444, %v446
    %v448 = vpack.c.bf16 %v442, %v442
    %450 = vrot.lane.b32.xlu0 %v448, 32
    %v451 = vpop.permute.xlu0 %450
    %v453 = vsel %vm71, %v451, 0
    %455 = vmatpush.bf16.msra.mxu0 0
    %456 = vmatpush.bf16.msra.mxu0 0
    %457 = vmatpush.bf16.msra.mxu0 0
    %458 = vmatpush.bf16.msra.mxu0 0
    %459 = vmatpush.bf16.msra.mxu0 0
    %460 = vmatpush.bf16.msra.mxu0 0
    %461 = vmatpush.bf16.msra.mxu0 %v106
    %462 = vmatpush.bf16.msra.mxu0 %v105
    %463 = vmatmul.bf16.gmra.mxu0 %v453
    %v464 = vpop.f32.mrf.mxu0
    %v465 = vadd.f32 0.0, %v464
    %v466 = vpop.f32.mrf.mxu0
    %467 = vdwg.mxu0
    %v469 = vrot.slane %v465, 4
    %v471 = vadd.f32 %v93, %v469
    %v472 = vxor.u32 %v471, 2147483648
    %v473 = vmul.f32 %v472, 1.442695
    %v474 = vpow.pop %v473
    %v475 = vadd.f32 %v474, 1.0
    %v476 = vrcp.pop %v475
    %v477 = vmul.f32 %v475, %v476
    %v478 = vsub.f32 1.0, %v477
    %v479 = vmul.f32 %v476, %v478
    %v480 = vadd.f32 %v476, %v479
    %vm481 = vweird.f32 %v475
    %vm482 = vweird.f32 %v476
    %vm483 = vmor %vm481, %vm482
    %v484 = vsel %vm483, %v476, %v480
    %v485 = vand.u32 2147483647, %v475
    %vm486 = vcmp.eq.f32.partialorder %v485, 8.507059e+37
    %v487 = vand.u32 %v475, 2147483648
    %v488 = vor.u32 1.1754944e-38, %v487
    %v489 = vsel %vm486, %v488, %v484
    %v490 = vmul.f32 1.0, %v489
    %v491 = vtanh.pop %v471
    %v493 = vrot.slane %v436, 4
    %v495 = vmul.f32 %v490, %v493
    %497 = vrot.lane.b32.xlu0 %v491, 64
    %v498 = vpop.permute.xlu0 %497
    %v500 = vmul.f32 %v490, %v498
    %502 = vrot.lane.b32.xlu0 %v500, 32
    %v503 = vpop.permute.xlu0 %502
    %v505 = vadd.f32 %v495, %v503
    %v506 = vtanh.pop %v505
    %508 = vrot.lane.b32.xlu0 %v506, 64
    %v509 = vpop.permute.xlu0 %508
    %v511 = vmul.f32 %v490, %v509
    %v512 = vmul.f32 %v511, %v165
    %v513 = vadd.f32 %v512, %v170
    %vm514 = vcmp.ge.f32.partialorder %v513, 0.0
    %v515 = vmul.f32 %v513, 0.01
    %v516 = vsel %vm514, %v513, %v515
    %v517 = vpack.c.bf16 %v511, %v511
    %v519 = vrot.slane %v517, 2
    %520 = vrot.lane.b32.xlu0 %v519, 32
    %v521 = vpop.permute.xlu0 %520
    %v523 = vsel %vm71, %v521, 0
    %525 = vmatpush.bf16.msra.mxu0 0
    %526 = vmatpush.bf16.msra.mxu0 0
    %527 = vmatpush.bf16.msra.mxu0 0
    %528 = vmatpush.bf16.msra.mxu0 0
    %529 = vmatpush.bf16.msra.mxu0 0
    %530 = vmatpush.bf16.msra.mxu0 0
    %531 = vmatpush.bf16.msra.mxu0 %v106
    %532 = vmatpush.bf16.msra.mxu0 %v105
    %533 = vmatmul.bf16.gmra.mxu0 %v523
    %v534 = vpop.f32.mrf.mxu0
    %v535 = vadd.f32 0.0, %v534
    %v536 = vpop.f32.mrf.mxu0
    %537 = vdwg.mxu0
    %v538 = vadd.f32 %v95, %v535
    %v539 = vxor.u32 %v538, 2147483648
    %v540 = vmul.f32 %v539, 1.442695
    %v541 = vpow.pop %v540
    %v542 = vadd.f32 %v541, 1.0
    %v543 = vrcp.pop %v542
    %v544 = vmul.f32 %v542, %v543
    %v545 = vsub.f32 1.0, %v544
    %v546 = vmul.f32 %v543, %v545
    %v547 = vadd.f32 %v543, %v546
    %vm548 = vweird.f32 %v542
    %vm549 = vweird.f32 %v543
    %vm550 = vmor %vm548, %vm549
    %v551 = vsel %vm550, %v543, %v547
    %v552 = vand.u32 2147483647, %v542
    %vm553 = vcmp.eq.f32.partialorder %v552, 8.507059e+37
    %v554 = vand.u32 %v542, 2147483648
    %v555 = vor.u32 1.1754944e-38, %v554
    %v556 = vsel %vm553, %v555, %v551
    %v557 = vmul.f32 1.0, %v556
    %v558 = vtanh.pop %v538
    %v560 = vrot.slane %v505, 4
    %v562 = vmul.f32 %v557, %v560
    %564 = vrot.lane.b32.xlu0 %v558, 64
    %v565 = vpop.permute.xlu0 %564
    %v567 = vmul.f32 %v557, %v565
    %569 = vrot.lane.b32.xlu0 %v567, 32
    %v570 = vpop.permute.xlu0 %569
    %v572 = vadd.f32 %v562, %v570
    %v573 = vtanh.pop %v572
    %575 = vrot.lane.b32.xlu0 %v573, 64
    %v576 = vpop.permute.xlu0 %575
    %v578 = vmul.f32 %v557, %v576
    %v579 = vmul.f32 %v578, %v165
    %v580 = vadd.f32 %v579, %v170
    %vm581 = vcmp.ge.f32.partialorder %v580, 0.0
    %v582 = vmul.f32 %v580, 0.01
    %v583 = vsel %vm581, %v580, %v582
    %v584 = vpack.c.bf16 %v578, %v578
    %586 = vrot.lane.b32.xlu0 %v584, 32
    %v587 = vpop.permute.xlu0 %586
    %v589 = vsel %vm71, %v587, 0
    %591 = vmatpush.bf16.msra.mxu0 0
    %592 = vmatpush.bf16.msra.mxu0 0
    %593 = vmatpush.bf16.msra.mxu0 0
    %594 = vmatpush.bf16.msra.mxu0 0
    %595 = vmatpush.bf16.msra.mxu0 0
    %596 = vmatpush.bf16.msra.mxu0 0
    %597 = vmatpush.bf16.msra.mxu0 %v106
    %598 = vmatpush.bf16.msra.mxu0 %v105
    %599 = vmatmul.bf16.gmra.mxu0 %v589
    %v600 = vpop.f32.mrf.mxu0
    %v601 = vadd.f32 0.0, %v600
    %v602 = vpop.f32.mrf.mxu0
    %603 = vdwg.mxu0
    %v605 = vrot.slane %v601, 4
    %v607 = vadd.f32 %v95, %v605
    %v608 = vxor.u32 %v607, 2147483648
    %v609 = vmul.f32 %v608, 1.442695
    %v610 = vpow.pop %v609
    %v611 = vadd.f32 %v610, 1.0
    %v612 = vrcp.pop %v611
    %v613 = vmul.f32 %v611, %v612
    %v614 = vsub.f32 1.0, %v613
    %v615 = vmul.f32 %v612, %v614
    %v616 = vadd.f32 %v612, %v615
    %vm617 = vweird.f32 %v611
    %vm618 = vweird.f32 %v612
    %vm619 = vmor %vm617, %vm618
    %v620 = vsel %vm619, %v612, %v616
    %v621 = vand.u32 2147483647, %v611
    %vm622 = vcmp.eq.f32.partialorder %v621, 8.507059e+37
    %v623 = vand.u32 %v611, 2147483648
    %v624 = vor.u32 1.1754944e-38, %v623
    %v625 = vsel %vm622, %v624, %v620
    %v626 = vmul.f32 1.0, %v625
    %v627 = vtanh.pop %v607
    %v629 = vrot.slane %v572, 4
    %v631 = vmul.f32 %v626, %v629
    %633 = vrot.lane.b32.xlu0 %v627, 64
    %v634 = vpop.permute.xlu0 %633
    %v636 = vmul.f32 %v626, %v634
    %638 = vrot.lane.b32.xlu0 %v636, 32
    %v639 = vpop.permute.xlu0 %638
    %v641 = vadd.f32 %v631, %v639
    %v642 = vtanh.pop %v641
    %644 = vrot.lane.b32.xlu0 %v642, 64
    %v645 = vpop.permute.xlu0 %644
    %v647 = vmul.f32 %v626, %v645
    %v648 = vmul.f32 %v647, %v165
    %v649 = vadd.f32 %v648, %v170
    %vm650 = vcmp.ge.f32.partialorder %v649, 0.0
    %v651 = vmul.f32 %v649, 0.01
    %v652 = vsel %vm650, %v649, %v651
    %vm653 = vcmask 1043456
    %v654 = vsel %vm653, %v175, %v244
    %v655 = vsel %vm653, %v311, %v380
    %v656 = vsel %vm653, %v447, %v516
    %v657 = vsel %vm653, %v583, %v652
    %v658 = vpack.c.bf16 %v655, %v654
    %v659 = vpack.c.bf16 %v657, %v656
    %s660 = scalar_lea.vmem %s1, 16
    %v661 = vld [vmem:[%s660] sm:$0xf]
    %v662 = vld [vmem:[%s660 + $0x4] sm:$0xf]
    %v663 = vld [vmem:[%s660 + $0x8] sm:$0xf]
    %v664 = vld [vmem:[%s660 + $0xc] sm:$0xf]
    %s665 = scalar_lea.vmem %s2, 16
    %v666 = vld [vmem:[%s665] sm:$0xf]
    %v667 = vld [vmem:[%s665 + $0x4] sm:$0xf]
    %v668 = vld [vmem:[%s665 + $0x8] sm:$0xf]
    %v669 = vld [vmem:[%s665 + $0xc] sm:$0xf]
    %v670 = vperm.slane %v33, 0
    %v671 = vperm.slane %v33, 1
    %v672 = vperm.slane %v31, 1
    %675 = vrot.lane.b32.xlu0 %v658, 32
    %v676 = vpop.permute.xlu0 %675
    %677 = vrot.lane.b32.xlu0 %v659, 32
    %v678 = vpop.permute.xlu0 %677
    %v683 = vunpack.c.l.b16 %v661
    %v684 = vunpack.c.l.b16 %v662
    %v685 = vunpack.c.l.b16 %v663
    %v686 = vunpack.c.l.b16 %v664
    %v687 = vpack.c.b16 %v684, %v683
    %v688 = vpack.c.b16 %v686, %v685
    %v692 = vsel %vm71, %v676, 0
    %v695 = vsel %vm71, %v678, 0
    %697 = vmatpush.bf16.msra.mxu0 0
    %698 = vmatpush.bf16.msra.mxu0 0
    %699 = vmatpush.bf16.msra.mxu0 0
    %700 = vmatpush.bf16.msra.mxu0 0
    %701 = vmatpush.bf16.msra.mxu0 0
    %702 = vmatpush.bf16.msra.mxu0 0
    %703 = vmatpush.bf16.msra.mxu0 %v688
    %704 = vmatpush.bf16.msra.mxu0 %v687
    %705 = vmatmul.bf16.gmra.mxu0 %v692
    %v706 = vpop.f32.mrf.mxu0
    %v707 = vadd.f32 %v672, %v706
    %v708 = vpop.f32.mrf.mxu0
    %v709 = vadd.f32 %v672, %v708
    %710 = vmatmul.bf16.gmra.mxu0 %v695
    %v711 = vpop.f32.mrf.mxu0
    %v712 = vadd.f32 %v672, %v711
    %v713 = vpop.f32.mrf.mxu0
    %v714 = vadd.f32 %v672, %v713
    %715 = vdwg.mxu0
    %v716 = vpack.c.bf16 %v647, %v647
    %v718 = vrot.slane %v716, 2
    %719 = vrot.lane.b32.xlu0 %v718, 32
    %v720 = vpop.permute.xlu0 %719
    %v725 = vunpack.c.l.b16 %v666
    %v726 = vunpack.c.l.b16 %v667
    %v727 = vunpack.c.l.b16 %v668
    %v728 = vunpack.c.l.b16 %v669
    %v729 = vpack.c.b16 %v726, %v725
    %v730 = vpack.c.b16 %v728, %v727
    %v734 = vsel %vm71, %v720, 0
    %736 = vmatpush.bf16.msra.mxu0 0
    %737 = vmatpush.bf16.msra.mxu0 0
    %738 = vmatpush.bf16.msra.mxu0 0
    %739 = vmatpush.bf16.msra.mxu0 0
    %740 = vmatpush.bf16.msra.mxu0 0
    %741 = vmatpush.bf16.msra.mxu0 0
    %742 = vmatpush.bf16.msra.mxu0 %v730
    %743 = vmatpush.bf16.msra.mxu0 %v729
    %744 = vmatmul.bf16.gmra.mxu0 %v734
    %v745 = vpop.f32.mrf.mxu0
    %v746 = vadd.f32 0.0, %v745
    %v747 = vpop.f32.mrf.mxu0
    %748 = vdwg.mxu0
    %v749 = vadd.f32 %v707, %v746
    %v750 = vxor.u32 %v749, 2147483648
    %v751 = vmul.f32 %v750, 1.442695
    %v752 = vpow.pop %v751
    %v753 = vadd.f32 %v752, 1.0
    %v754 = vrcp.pop %v753
    %v755 = vmul.f32 %v753, %v754
    %v756 = vsub.f32 1.0, %v755
    %v757 = vmul.f32 %v754, %v756
    %v758 = vadd.f32 %v754, %v757
    %vm759 = vweird.f32 %v753
    %vm760 = vweird.f32 %v754
    %vm761 = vmor %vm759, %vm760
    %v762 = vsel %vm761, %v754, %v758
    %v763 = vand.u32 2147483647, %v753
    %vm764 = vcmp.eq.f32.partialorder %v763, 8.507059e+37
    %v765 = vand.u32 %v753, 2147483648
    %v766 = vor.u32 1.1754944e-38, %v765
    %v767 = vsel %vm764, %v766, %v762
    %v768 = vmul.f32 1.0, %v767
    %v769 = vtanh.pop %v749
    %v771 = vrot.slane %v641, 4
    %v773 = vmul.f32 %v768, %v771
    %775 = vrot.lane.b32.xlu0 %v769, 64
    %v776 = vpop.permute.xlu0 %775
    %v778 = vmul.f32 %v768, %v776
    %780 = vrot.lane.b32.xlu0 %v778, 32
    %v781 = vpop.permute.xlu0 %780
    %v783 = vadd.f32 %v773, %v781
    %v784 = vtanh.pop %v783
    %786 = vrot.lane.b32.xlu0 %v784, 64
    %v787 = vpop.permute.xlu0 %786
    %v789 = vmul.f32 %v768, %v787
    %791 = vrot.lane.b32.xlu0 %v670, 96
    %v792 = vpop.permute.xlu0 %791
    %v794 = vmul.f32 %v789, %v792
    %796 = vrot.lane.b32.xlu0 %v671, 96
    %v797 = vpop.permute.xlu0 %796
    %v799 = vadd.f32 %v794, %v797
    %vm800 = vcmp.ge.f32.partialorder %v799, 0.0
    %v801 = vmul.f32 %v799, 0.01
    %v802 = vsel %vm800, %v799, %v801
    %v803 = vpack.c.bf16 %v789, %v789
    %805 = vrot.lane.b32.xlu0 %v803, 32
    %v806 = vpop.permute.xlu0 %805
    %v808 = vsel %vm71, %v806, 0
    %810 = vmatpush.bf16.msra.mxu0 0
    %811 = vmatpush.bf16.msra.mxu0 0
    %812 = vmatpush.bf16.msra.mxu0 0
    %813 = vmatpush.bf16.msra.mxu0 0
    %814 = vmatpush.bf16.msra.mxu0 0
    %815 = vmatpush.bf16.msra.mxu0 0
    %816 = vmatpush.bf16.msra.mxu0 %v730
    %817 = vmatpush.bf16.msra.mxu0 %v729
    %818 = vmatmul.bf16.gmra.mxu0 %v808
    %v819 = vpop.f32.mrf.mxu0
    %v820 = vadd.f32 0.0, %v819
    %v821 = vpop.f32.mrf.mxu0
    %822 = vdwg.mxu0
    %v824 = vrot.slane %v820, 4
    %v826 = vadd.f32 %v707, %v824
    %v827 = vxor.u32 %v826, 2147483648
    %v828 = vmul.f32 %v827, 1.442695
    %v829 = vpow.pop %v828
    %v830 = vadd.f32 %v829, 1.0
    %v831 = vrcp.pop %v830
    %v832 = vmul.f32 %v830, %v831
    %v833 = vsub.f32 1.0, %v832
    %v834 = vmul.f32 %v831, %v833
    %v835 = vadd.f32 %v831, %v834
    %vm836 = vweird.f32 %v830
    %vm837 = vweird.f32 %v831
    %vm838 = vmor %vm836, %vm837
    %v839 = vsel %vm838, %v831, %v835
    %v840 = vand.u32 2147483647, %v830
    %vm841 = vcmp.eq.f32.partialorder %v840, 8.507059e+37
    %v842 = vand.u32 %v830, 2147483648
    %v843 = vor.u32 1.1754944e-38, %v842
    %v844 = vsel %vm841, %v843, %v839
    %v845 = vmul.f32 1.0, %v844
    %v846 = vtanh.pop %v826
    %v848 = vrot.slane %v783, 4
    %v850 = vmul.f32 %v845, %v848
    %852 = vrot.lane.b32.xlu0 %v846, 64
    %v853 = vpop.permute.xlu0 %852
    %v855 = vmul.f32 %v845, %v853
    %857 = vrot.lane.b32.xlu0 %v855, 32
    %v858 = vpop.permute.xlu0 %857
    %v860 = vadd.f32 %v850, %v858
    %v861 = vtanh.pop %v860
    %863 = vrot.lane.b32.xlu0 %v861, 64
    %v864 = vpop.permute.xlu0 %863
    %v866 = vmul.f32 %v845, %v864
    %v867 = vmul.f32 %v866, %v792
    %v868 = vadd.f32 %v867, %v797
    %vm869 = vcmp.ge.f32.partialorder %v868, 0.0
    %v870 = vmul.f32 %v868, 0.01
    %v871 = vsel %vm869, %v868, %v870
    %v872 = vpack.c.bf16 %v866, %v866
    %v874 = vrot.slane %v872, 2
    %875 = vrot.lane.b32.xlu0 %v874, 32
    %v876 = vpop.permute.xlu0 %875
    %v878 = vsel %vm71, %v876, 0
    %880 = vmatpush.bf16.msra.mxu0 0
    %881 = vmatpush.bf16.msra.mxu0 0
    %882 = vmatpush.bf16.msra.mxu0 0
    %883 = vmatpush.bf16.msra.mxu0 0
    %884 = vmatpush.bf16.msra.mxu0 0
    %885 = vmatpush.bf16.msra.mxu0 0
    %886 = vmatpush.bf16.msra.mxu0 %v730
    %887 = vmatpush.bf16.msra.mxu0 %v729
    %888 = vmatmul.bf16.gmra.mxu0 %v878
    %v889 = vpop.f32.mrf.mxu0
    %v890 = vadd.f32 0.0, %v889
    %v891 = vpop.f32.mrf.mxu0
    %892 = vdwg.mxu0
    %v893 = vadd.f32 %v709, %v890
    %v894 = vxor.u32 %v893, 2147483648
    %v895 = vmul.f32 %v894, 1.442695
    %v896 = vpow.pop %v895
    %v897 = vadd.f32 %v896, 1.0
    %v898 = vrcp.pop %v897
    %v899 = vmul.f32 %v897, %v898
    %v900 = vsub.f32 1.0, %v899
    %v901 = vmul.f32 %v898, %v900
    %v902 = vadd.f32 %v898, %v901
    %vm903 = vweird.f32 %v897
    %vm904 = vweird.f32 %v898
    %vm905 = vmor %vm903, %vm904
    %v906 = vsel %vm905, %v898, %v902
    %v907 = vand.u32 2147483647, %v897
    %vm908 = vcmp.eq.f32.partialorder %v907, 8.507059e+37
    %v909 = vand.u32 %v897, 2147483648
    %v910 = vor.u32 1.1754944e-38, %v909
    %v911 = vsel %vm908, %v910, %v906
    %v912 = vmul.f32 1.0, %v911
    %v913 = vtanh.pop %v893
    %v915 = vrot.slane %v860, 4
    %v917 = vmul.f32 %v912, %v915
    %919 = vrot.lane.b32.xlu0 %v913, 64
    %v920 = vpop.permute.xlu0 %919
    %v922 = vmul.f32 %v912, %v920
    %924 = vrot.lane.b32.xlu0 %v922, 32
    %v925 = vpop.permute.xlu0 %924
    %v927 = vadd.f32 %v917, %v925
    %v928 = vtanh.pop %v927
    %930 = vrot.lane.b32.xlu0 %v928, 64
    %v931 = vpop.permute.xlu0 %930
    %v933 = vmul.f32 %v912, %v931
    %v934 = vmul.f32 %v933, %v792
    %v935 = vadd.f32 %v934, %v797
    %vm936 = vcmp.ge.f32.partialorder %v935, 0.0
    %v937 = vmul.f32 %v935, 0.01
    %v938 = vsel %vm936, %v935, %v937
    %v939 = vpack.c.bf16 %v933, %v933
    %941 = vrot.lane.b32.xlu0 %v939, 32
    %v942 = vpop.permute.xlu0 %941
    %v944 = vsel %vm71, %v942, 0
    %946 = vmatpush.bf16.msra.mxu0 0
    %947 = vmatpush.bf16.msra.mxu0 0
    %948 = vmatpush.bf16.msra.mxu0 0
    %949 = vmatpush.bf16.msra.mxu0 0
    %950 = vmatpush.bf16.msra.mxu0 0
    %951 = vmatpush.bf16.msra.mxu0 0
    %952 = vmatpush.bf16.msra.mxu0 %v730
    %953 = vmatpush.bf16.msra.mxu0 %v729
    %954 = vmatmul.bf16.gmra.mxu0 %v944
    %v955 = vpop.f32.mrf.mxu0
    %v956 = vadd.f32 0.0, %v955
    %v957 = vpop.f32.mrf.mxu0
    %958 = vdwg.mxu0
    %v960 = vrot.slane %v956, 4
    %v962 = vadd.f32 %v709, %v960
    %v963 = vxor.u32 %v962, 2147483648
    %v964 = vmul.f32 %v963, 1.442695
    %v965 = vpow.pop %v964
    %v966 = vadd.f32 %v965, 1.0
    %v967 = vrcp.pop %v966
    %v968 = vmul.f32 %v966, %v967
    %v969 = vsub.f32 1.0, %v968
    %v970 = vmul.f32 %v967, %v969
    %v971 = vadd.f32 %v967, %v970
    %vm972 = vweird.f32 %v966
    %vm973 = vweird.f32 %v967
    %vm974 = vmor %vm972, %vm973
    %v975 = vsel %vm974, %v967, %v971
    %v976 = vand.u32 2147483647, %v966
    %vm977 = vcmp.eq.f32.partialorder %v976, 8.507059e+37
    %v978 = vand.u32 %v966, 2147483648
    %v979 = vor.u32 1.1754944e-38, %v978
    %v980 = vsel %vm977, %v979, %v975
    %v981 = vmul.f32 1.0, %v980
    %v982 = vtanh.pop %v962
    %v984 = vrot.slane %v927, 4
    %v986 = vmul.f32 %v981, %v984
    %988 = vrot.lane.b32.xlu0 %v982, 64
    %v989 = vpop.permute.xlu0 %988
    %v991 = vmul.f32 %v981, %v989
    %993 = vrot.lane.b32.xlu0 %v991, 32
    %v994 = vpop.permute.xlu0 %993
    %v996 = vadd.f32 %v986, %v994
    %v997 = vtanh.pop %v996
    %999 = vrot.lane.b32.xlu0 %v997, 64
    %v1000 = vpop.permute.xlu0 %999
    %v1002 = vmul.f32 %v981, %v1000
    %v1003 = vmul.f32 %v1002, %v792
    %v1004 = vadd.f32 %v1003, %v797
    %vm1005 = vcmp.ge.f32.partialorder %v1004, 0.0
    %v1006 = vmul.f32 %v1004, 0.01
    %v1007 = vsel %vm1005, %v1004, %v1006
    %v1008 = vpack.c.bf16 %v1002, %v1002
    %v1010 = vrot.slane %v1008, 2
    %1011 = vrot.lane.b32.xlu0 %v1010, 32
    %v1012 = vpop.permute.xlu0 %1011
    %v1014 = vsel %vm71, %v1012, 0
    %1016 = vmatpush.bf16.msra.mxu0 0
    %1017 = vmatpush.bf16.msra.mxu0 0
    %1018 = vmatpush.bf16.msra.mxu0 0
    %1019 = vmatpush.bf16.msra.mxu0 0
    %1020 = vmatpush.bf16.msra.mxu0 0
    %1021 = vmatpush.bf16.msra.mxu0 0
    %1022 = vmatpush.bf16.msra.mxu0 %v730
    %1023 = vmatpush.bf16.msra.mxu0 %v729
    %1024 = vmatmul.bf16.gmra.mxu0 %v1014
    %v1025 = vpop.f32.mrf.mxu0
    %v1026 = vadd.f32 0.0, %v1025
    %v1027 = vpop.f32.mrf.mxu0
    %1028 = vdwg.mxu0
    %v1029 = vadd.f32 %v712, %v1026
    %v1030 = vxor.u32 %v1029, 2147483648
    %v1031 = vmul.f32 %v1030, 1.442695
    %v1032 = vpow.pop %v1031
    %v1033 = vadd.f32 %v1032, 1.0
    %v1034 = vrcp.pop %v1033
    %v1035 = vmul.f32 %v1033, %v1034
    %v1036 = vsub.f32 1.0, %v1035
    %v1037 = vmul.f32 %v1034, %v1036
    %v1038 = vadd.f32 %v1034, %v1037
    %vm1039 = vweird.f32 %v1033
    %vm1040 = vweird.f32 %v1034
    %vm1041 = vmor %vm1039, %vm1040
    %v1042 = vsel %vm1041, %v1034, %v1038
    %v1043 = vand.u32 2147483647, %v1033
    %vm1044 = vcmp.eq.f32.partialorder %v1043, 8.507059e+37
    %v1045 = vand.u32 %v1033, 2147483648
    %v1046 = vor.u32 1.1754944e-38, %v1045
    %v1047 = vsel %vm1044, %v1046, %v1042
    %v1048 = vmul.f32 1.0, %v1047
    %v1049 = vtanh.pop %v1029
    %v1051 = vrot.slane %v996, 4
    %v1053 = vmul.f32 %v1048, %v1051
    %1055 = vrot.lane.b32.xlu0 %v1049, 64
    %v1056 = vpop.permute.xlu0 %1055
    %v1058 = vmul.f32 %v1048, %v1056
    %1060 = vrot.lane.b32.xlu0 %v1058, 32
    %v1061 = vpop.permute.xlu0 %1060
    %v1063 = vadd.f32 %v1053, %v1061
    %v1064 = vtanh.pop %v1063
    %1066 = vrot.lane.b32.xlu0 %v1064, 64
    %v1067 = vpop.permute.xlu0 %1066
    %v1069 = vmul.f32 %v1048, %v1067
    %v1070 = vmul.f32 %v1069, %v792
    %v1071 = vadd.f32 %v1070, %v797
    %vm1072 = vcmp.ge.f32.partialorder %v1071, 0.0
    %v1073 = vmul.f32 %v1071, 0.01
    %v1074 = vsel %vm1072, %v1071, %v1073
    %v1075 = vpack.c.bf16 %v1069, %v1069
    %1077 = vrot.lane.b32.xlu0 %v1075, 32
    %v1078 = vpop.permute.xlu0 %1077
    %v1080 = vsel %vm71, %v1078, 0
    %1082 = vmatpush.bf16.msra.mxu0 0
    %1083 = vmatpush.bf16.msra.mxu0 0
    %1084 = vmatpush.bf16.msra.mxu0 0
    %1085 = vmatpush.bf16.msra.mxu0 0
    %1086 = vmatpush.bf16.msra.mxu0 0
    %1087 = vmatpush.bf16.msra.mxu0 0
    %1088 = vmatpush.bf16.msra.mxu0 %v730
    %1089 = vmatpush.bf16.msra.mxu0 %v729
    %1090 = vmatmul.bf16.gmra.mxu0 %v1080
    %v1091 = vpop.f32.mrf.mxu0
    %v1092 = vadd.f32 0.0, %v1091
    %v1093 = vpop.f32.mrf.mxu0
    %1094 = vdwg.mxu0
    %v1096 = vrot.slane %v1092, 4
    %v1098 = vadd.f32 %v712, %v1096
    %v1099 = vxor.u32 %v1098, 2147483648
    %v1100 = vmul.f32 %v1099, 1.442695
    %v1101 = vpow.pop %v1100
    %v1102 = vadd.f32 %v1101, 1.0
    %v1103 = vrcp.pop %v1102
    %v1104 = vmul.f32 %v1102, %v1103
    %v1105 = vsub.f32 1.0, %v1104
    %v1106 = vmul.f32 %v1103, %v1105
    %v1107 = vadd.f32 %v1103, %v1106
    %vm1108 = vweird.f32 %v1102
    %vm1109 = vweird.f32 %v1103
    %vm1110 = vmor %vm1108, %vm1109
    %v1111 = vsel %vm1110, %v1103, %v1107
    %v1112 = vand.u32 2147483647, %v1102
    %vm1113 = vcmp.eq.f32.partialorder %v1112, 8.507059e+37
    %v1114 = vand.u32 %v1102, 2147483648
    %v1115 = vor.u32 1.1754944e-38, %v1114
    %v1116 = vsel %vm1113, %v1115, %v1111
    %v1117 = vmul.f32 1.0, %v1116
    %v1118 = vtanh.pop %v1098
    %v1120 = vrot.slane %v1063, 4
    %v1122 = vmul.f32 %v1117, %v1120
    %1124 = vrot.lane.b32.xlu0 %v1118, 64
    %v1125 = vpop.permute.xlu0 %1124
    %v1127 = vmul.f32 %v1117, %v1125
    %1129 = vrot.lane.b32.xlu0 %v1127, 32
    %v1130 = vpop.permute.xlu0 %1129
    %v1132 = vadd.f32 %v1122, %v1130
    %v1133 = vtanh.pop %v1132
    %1135 = vrot.lane.b32.xlu0 %v1133, 64
    %v1136 = vpop.permute.xlu0 %1135
    %v1138 = vmul.f32 %v1117, %v1136
    %v1139 = vmul.f32 %v1138, %v792
    %v1140 = vadd.f32 %v1139, %v797
    %vm1141 = vcmp.ge.f32.partialorder %v1140, 0.0
    %v1142 = vmul.f32 %v1140, 0.01
    %v1143 = vsel %vm1141, %v1140, %v1142
    %v1144 = vpack.c.bf16 %v1138, %v1138
    %v1146 = vrot.slane %v1144, 2
    %1147 = vrot.lane.b32.xlu0 %v1146, 32
    %v1148 = vpop.permute.xlu0 %1147
    %v1150 = vsel %vm71, %v1148, 0
    %1152 = vmatpush.bf16.msra.mxu0 0
    %1153 = vmatpush.bf16.msra.mxu0 0
    %1154 = vmatpush.bf16.msra.mxu0 0
    %1155 = vmatpush.bf16.msra.mxu0 0
    %1156 = vmatpush.bf16.msra.mxu0 0
    %1157 = vmatpush.bf16.msra.mxu0 0
    %1158 = vmatpush.bf16.msra.mxu0 %v730
    %1159 = vmatpush.bf16.msra.mxu0 %v729
    %1160 = vmatmul.bf16.gmra.mxu0 %v1150
    %v1161 = vpop.f32.mrf.mxu0
    %v1162 = vadd.f32 0.0, %v1161
    %v1163 = vpop.f32.mrf.mxu0
    %1164 = vdwg.mxu0
    %v1165 = vadd.f32 %v714, %v1162
    %v1166 = vxor.u32 %v1165, 2147483648
    %v1167 = vmul.f32 %v1166, 1.442695
    %v1168 = vpow.pop %v1167
    %v1169 = vadd.f32 %v1168, 1.0
    %v1170 = vrcp.pop %v1169
    %v1171 = vmul.f32 %v1169, %v1170
    %v1172 = vsub.f32 1.0, %v1171
    %v1173 = vmul.f32 %v1170, %v1172
    %v1174 = vadd.f32 %v1170, %v1173
    %vm1175 = vweird.f32 %v1169
    %vm1176 = vweird.f32 %v1170
    %vm1177 = vmor %vm1175, %vm1176
    %v1178 = vsel %vm1177, %v1170, %v1174
    %v1179 = vand.u32 2147483647, %v1169
    %vm1180 = vcmp.eq.f32.partialorder %v1179, 8.507059e+37
    %v1181 = vand.u32 %v1169, 2147483648
    %v1182 = vor.u32 1.1754944e-38, %v1181
    %v1183 = vsel %vm1180, %v1182, %v1178
    %v1184 = vmul.f32 1.0, %v1183
    %v1185 = vtanh.pop %v1165
    %v1187 = vrot.slane %v1132, 4
    %v1189 = vmul.f32 %v1184, %v1187
    %1191 = vrot.lane.b32.xlu0 %v1185, 64
    %v1192 = vpop.permute.xlu0 %1191
    %v1194 = vmul.f32 %v1184, %v1192
    %1196 = vrot.lane.b32.xlu0 %v1194, 32
    %v1197 = vpop.permute.xlu0 %1196
    %v1199 = vadd.f32 %v1189, %v1197
    %v1200 = vtanh.pop %v1199
    %1202 = vrot.lane.b32.xlu0 %v1200, 64
    %v1203 = vpop.permute.xlu0 %1202
    %v1205 = vmul.f32 %v1184, %v1203
    %v1206 = vmul.f32 %v1205, %v792
    %v1207 = vadd.f32 %v1206, %v797
    %vm1208 = vcmp.ge.f32.partialorder %v1207, 0.0
    %v1209 = vmul.f32 %v1207, 0.01
    %v1210 = vsel %vm1208, %v1207, %v1209
    %v1211 = vpack.c.bf16 %v1205, %v1205
    %1213 = vrot.lane.b32.xlu0 %v1211, 32
    %v1214 = vpop.permute.xlu0 %1213
    %v1216 = vsel %vm71, %v1214, 0
    %1218 = vmatpush.bf16.msra.mxu0 0
    %1219 = vmatpush.bf16.msra.mxu0 0
    %1220 = vmatpush.bf16.msra.mxu0 0
    %1221 = vmatpush.bf16.msra.mxu0 0
    %1222 = vmatpush.bf16.msra.mxu0 0
    %1223 = vmatpush.bf16.msra.mxu0 0
    %1224 = vmatpush.bf16.msra.mxu0 %v730
    %1225 = vmatpush.bf16.msra.mxu0 %v729
    %1226 = vmatmul.bf16.gmra.mxu0 %v1216
    %v1227 = vpop.f32.mrf.mxu0
    %v1228 = vadd.f32 0.0, %v1227
    %v1229 = vpop.f32.mrf.mxu0
    %1230 = vdwg.mxu0
    %v1232 = vrot.slane %v1228, 4
    %v1234 = vadd.f32 %v714, %v1232
    %v1235 = vxor.u32 %v1234, 2147483648
    %v1236 = vmul.f32 %v1235, 1.442695
    %v1237 = vpow.pop %v1236
    %v1238 = vadd.f32 %v1237, 1.0
    %v1239 = vrcp.pop %v1238
    %v1240 = vmul.f32 %v1238, %v1239
    %v1241 = vsub.f32 1.0, %v1240
    %v1242 = vmul.f32 %v1239, %v1241
    %v1243 = vadd.f32 %v1239, %v1242
    %vm1244 = vweird.f32 %v1238
    %vm1245 = vweird.f32 %v1239
    %vm1246 = vmor %vm1244, %vm1245
    %v1247 = vsel %vm1246, %v1239, %v1243
    %v1248 = vand.u32 2147483647, %v1238
    %vm1249 = vcmp.eq.f32.partialorder %v1248, 8.507059e+37
    %v1250 = vand.u32 %v1238, 2147483648
    %v1251 = vor.u32 1.1754944e-38, %v1250
    %v1252 = vsel %vm1249, %v1251, %v1247
    %v1253 = vmul.f32 1.0, %v1252
    %v1254 = vtanh.pop %v1234
    %v1256 = vrot.slane %v1199, 4
    %v1258 = vmul.f32 %v1253, %v1256
    %1260 = vrot.lane.b32.xlu0 %v1254, 64
    %v1261 = vpop.permute.xlu0 %1260
    %v1263 = vmul.f32 %v1253, %v1261
    %1265 = vrot.lane.b32.xlu0 %v1263, 32
    %v1266 = vpop.permute.xlu0 %1265
    %v1268 = vadd.f32 %v1258, %v1266
    %v1269 = vtanh.pop %v1268
    %1271 = vrot.lane.b32.xlu0 %v1269, 64
    %v1272 = vpop.permute.xlu0 %1271
    %v1274 = vmul.f32 %v1253, %v1272
    %v1275 = vmul.f32 %v1274, %v792
    %v1276 = vadd.f32 %v1275, %v797
    %vm1277 = vcmp.ge.f32.partialorder %v1276, 0.0
    %v1278 = vmul.f32 %v1276, 0.01
    %v1279 = vsel %vm1277, %v1276, %v1278
    %1281 = vrot.lane.b32.xlu0 %v802, 32
    %v1282 = vpop.permute.xlu0 %1281
    %v1285 = vrot.slane %v871, 4
    %1286 = vrot.lane.b32.xlu0 %v1285, 64
    %v1287 = vpop.permute.xlu0 %1286
    %1290 = vrot.lane.b32.xlu0 %v938, 96
    %v1291 = vpop.permute.xlu0 %1290
    %v1294 = vrot.slane %v1007, 4
    %1297 = vrot.lane.b32.xlu0 %v1074, 32
    %v1298 = vpop.permute.xlu0 %1297
    %v1301 = vrot.slane %v1143, 4
    %1302 = vrot.lane.b32.xlu0 %v1301, 64
    %v1303 = vpop.permute.xlu0 %1302
    %1306 = vrot.lane.b32.xlu0 %v1210, 96
    %v1307 = vpop.permute.xlu0 %1306
    %v1310 = vrot.slane %v1279, 4
    %v1312 = vsel %vm71, %v1282, %v1287
    %vm1313 = vcmask 523264
    %v1314 = vsel %vm1313, %v1312, %v1291
    %vm1315 = vcmask 785408
    %v1316 = vsel %vm1315, %v1314, %v1294
    %v1317 = vsel %vm71, %v1298, %v1303
    %v1318 = vsel %vm1313, %v1317, %v1307
    %v1319 = vsel %vm1315, %v1318, %v1310
    %v1320 = vpack.c.bf16 %v1316, %v1316
    %v1321 = vpack.c.bf16 %v1319, %v1319
    %v1322 = vld [vmem:[%s5] sm:$0xf]
    %v1323 = vld [vmem:[%s5 + $0x4] sm:$0xf]
    %v1324 = vld [vmem:[%s5 + $0x8] sm:$0xf]
    %v1325 = vld [vmem:[%s5 + $0xc] sm:$0xf]
    %v1326 = vld [vmem:[%s5 + $0x10] sm:$0xf]
    %v1327 = vld [vmem:[%s5 + $0x14] sm:$0xf]
    %v1328 = vld [vmem:[%s5 + $0x18] sm:$0xf]
    %v1329 = vld [vmem:[%s5 + $0x1c] sm:$0xf]
    %v1330 = vld [vmem:[%s5 + $0x20] sm:$0xf]
    %v1331 = vld [vmem:[%s5 + $0x24] sm:$0xf]
    %v1332 = vld [vmem:[%s5 + $0x28] sm:$0xf]
    %v1333 = vld [vmem:[%s5 + $0x2c] sm:$0xf]
    %v1334 = vld [vmem:[%s5 + $0x30] sm:$0xf]
    %v1335 = vld [vmem:[%s5 + $0x34] sm:$0xf]
    %v1336 = vld [vmem:[%s5 + $0x38] sm:$0xf]
    %v1337 = vld [vmem:[%s5 + $0x3c] sm:$0xf]
    %v1338 = vld [vmem:[%s5 + $0x40] sm:$0xf]
    %v1339 = vld [vmem:[%s5 + $0x44] sm:$0xf]
    %v1340 = vld [vmem:[%s5 + $0x48] sm:$0xf]
    %v1341 = vld [vmem:[%s5 + $0x4c] sm:$0xf]
    %v1342 = vld [vmem:[%s5 + $0x50] sm:$0xf]
    %v1343 = vld [vmem:[%s5 + $0x54] sm:$0xf]
    %v1344 = vld [vmem:[%s5 + $0x58] sm:$0xf]
    %v1345 = vld [vmem:[%s5 + $0x5c] sm:$0xf]
    %v1346 = vld [vmem:[%s5 + $0x60] sm:$0xf]
    %v1347 = vld [vmem:[%s5 + $0x64] sm:$0xf]
    %v1348 = vld [vmem:[%s5 + $0x68] sm:$0xf]
    %v1349 = vld [vmem:[%s5 + $0x6c] sm:$0xf]
    %v1350 = vld [vmem:[%s5 + $0x70] sm:$0xf]
    %v1351 = vld [vmem:[%s5 + $0x74] sm:$0xf]
    %v1352 = vld [vmem:[%s5 + $0x78] sm:$0xf]
    %v1353 = vld [vmem:[%s5 + $0x7c] sm:$0xf]
    %v1354 = vld [vmem:[%s6] sm:$0x1]
    %v1356 = vperm.slane %v1354, 0
    %v1390 = vunpack.c.l.b16 %v1322
    %v1391 = vunpack.c.l.b16 %v1323
    %v1392 = vunpack.c.l.b16 %v1324
    %v1393 = vunpack.c.l.b16 %v1325
    %v1394 = vunpack.c.l.b16 %v1326
    %v1395 = vunpack.c.l.b16 %v1327
    %v1396 = vunpack.c.l.b16 %v1328
    %v1397 = vunpack.c.l.b16 %v1329
    %v1398 = vunpack.c.l.b16 %v1330
    %v1399 = vunpack.c.l.b16 %v1331
    %v1400 = vunpack.c.l.b16 %v1332
    %v1401 = vunpack.c.l.b16 %v1333
    %v1402 = vunpack.c.l.b16 %v1334
    %v1403 = vunpack.c.l.b16 %v1335
    %v1404 = vunpack.c.l.b16 %v1336
    %v1405 = vunpack.c.l.b16 %v1337
    %v1406 = vunpack.c.l.b16 %v1338
    %v1407 = vunpack.c.l.b16 %v1339
    %v1408 = vunpack.c.l.b16 %v1340
    %v1409 = vunpack.c.l.b16 %v1341
    %v1410 = vunpack.c.l.b16 %v1342
    %v1411 = vunpack.c.l.b16 %v1343
    %v1412 = vunpack.c.l.b16 %v1344
    %v1413 = vunpack.c.l.b16 %v1345
    %v1414 = vunpack.c.l.b16 %v1346
    %v1415 = vunpack.c.l.b16 %v1347
    %v1416 = vunpack.c.l.b16 %v1348
    %v1417 = vunpack.c.l.b16 %v1349
    %v1418 = vunpack.c.l.b16 %v1350
    %v1419 = vunpack.c.l.b16 %v1351
    %v1420 = vunpack.c.l.b16 %v1352
    %v1421 = vunpack.c.l.b16 %v1353
    %v1422 = vpack.c.b16 %v1391, %v1390
    %v1423 = vpack.c.b16 %v1393, %v1392
    %v1424 = vpack.c.b16 %v1395, %v1394
    %v1425 = vpack.c.b16 %v1397, %v1396
    %v1426 = vpack.c.b16 %v1399, %v1398
    %v1427 = vpack.c.b16 %v1401, %v1400
    %v1428 = vpack.c.b16 %v1403, %v1402
    %v1429 = vpack.c.b16 %v1405, %v1404
    %v1430 = vpack.c.b16 %v1407, %v1406
    %v1431 = vpack.c.b16 %v1409, %v1408
    %v1432 = vpack.c.b16 %v1411, %v1410
    %v1433 = vpack.c.b16 %v1413, %v1412
    %v1434 = vpack.c.b16 %v1415, %v1414
    %v1435 = vpack.c.b16 %v1417, %v1416
    %v1436 = vpack.c.b16 %v1419, %v1418
    %v1437 = vpack.c.b16 %v1421, %v1420
    %1454 = vmatpush.bf16.msra.mxu0 %v1429
    %1455 = vmatpush.bf16.msra.mxu0 %v1428
    %1456 = vmatpush.bf16.msra.mxu0 %v1427
    %1457 = vmatpush.bf16.msra.mxu0 %v1426
    %1458 = vmatpush.bf16.msra.mxu0 %v1425
    %1459 = vmatpush.bf16.msra.mxu0 %v1424
    %1460 = vmatpush.bf16.msra.mxu0 %v1423
    %1461 = vmatpush.bf16.msra.mxu0 %v1422
    %1462 = vmatmul.bf16.gmra.mxu0 %v1320
    %v1463 = vpop.f32.mrf.mxu0
    %v1464 = vadd.f32 %v1356, %v1463
    %v1465 = vpop.f32.mrf.mxu0
    %1466 = vdwg.mxu0
    %1467 = vmatpush.bf16.msra.mxu0 %v1437
    %1468 = vmatpush.bf16.msra.mxu0 %v1436
    %1469 = vmatpush.bf16.msra.mxu0 %v1435
    %1470 = vmatpush.bf16.msra.mxu0 %v1434
    %1471 = vmatpush.bf16.msra.mxu0 %v1433
    %1472 = vmatpush.bf16.msra.mxu0 %v1432
    %1473 = vmatpush.bf16.msra.mxu0 %v1431
    %1474 = vmatpush.bf16.msra.mxu0 %v1430
    %1475 = vmatmul.bf16.gmra.mxu0 %v1321
    %v1476 = vpop.f32.mrf.mxu0
    %v1477 = vadd.f32 %v1464, %v1476
    %v1478 = vpop.f32.mrf.mxu0
    %1479 = vdwg.mxu0
    %v1480 = vmax.f32 %v1477, 0.0
    %v1481 = vld [vmem:[%s7] sm:$0x3]
    %v1482 = vperm.slane %v1481, 0
    %v1483 = vmul.f32 %v1480, %v1482
    %v1484 = vperm.slane %v1481, 1
    %v1485 = vadd.f32 %v1483, %v1484
    %vm1486 = vcmask 60416
    %v1487 = vsel %vm1486, %v1485, -inf
    %1488 = vmax.xlane.f32.xlu0 %v1487
    %v1489 = vpop.xlane.xlu0 %1488
    %v1490 = vsub.f32 %v1485, %v1489
    %v1491 = vmul.f32 %v1490, 1.442695
    %v1492 = vpow.pop %v1491
    %v1493 = vsel %vm1486, %v1492, 0.0
    %1494 = vadd.xlane.f32.xlu0 %v1493
    %v1495 = vpop.xlane.xlu0 %1494
    %v1496 = vrcp.pop %v1495
    %v1497 = vmul.f32 %v1492, %v1496
    %1498 = vst.msk [vmem:[#allocation2] sm:$0xf] %vm1486, %v1497
    // Predicated region
    $region34: #{forward.1} parent=1 // pred_check
      _
    $region35: #{forward.1} parent=1 // pred_check_branch
      %1500 = sbr.rel (0) target = $region37
    $region36: #{forward.1} parent=1 // pred_region
      %1502 = vsyncadd [#allocation3], 0
      %s1504 = sshll.u32 [#allocation2], 4
      %s1505 = int_to_ptr.vmem [resolvable:$true] %s1504
      %s1506 = sshll.u32 %s8, 4
      %s1507 = int_to_ptr.hbm [resolvable:$true] %s1506
      %1509 = dma.vmem_to_hbm [thread:$0]  %s1505, 64, %s1507, [#allocation3]
    $region37: #{forward.1} parent=1 // pred_fallthru
      _
    // Predicated region
    $region38: #{forward.1} parent=1 // pred_check
      _
    $region39: #{forward.1} parent=1 // pred_check_branch
      %1511 = sbr.rel (0) target = $region41
    $region40: #{forward.1} parent=1 // pred_region
      %1513 = dma.done [#allocation3], 64
    $region41: #{forward.1} parent=1 // pred_fallthru
      _
    %1514 = vsyncpa [#allocation3], 1

</llo_original>
